<compile_context>
chip_gen: v7x
topology: tpu7x:2x2x1
jax: 0.10.0
libtpu: 0.0.40
codegen_flags: <defaults>
</compile_context>

<pallas_src>
import math
from functools import partial

import jax
import jax.numpy as jnp
import numpy as np
from jax.experimental import pallas as pl
from jax.experimental.pallas import tpu as pltpu


def _attention_pool_kernel(x_ref, t0_ref, wqkv_ref, bqkv_ref, mask_nc_ref,
                           mask_cn_ref, eexp_ref, esum_ref, wct_ref, bc_ref,
                           out_ref, *, num_heads):
    # x_ref:    [C, N]     bf16  spatial tokens (+pos emb), N = Bblk*S lane-concatenated
    # t0_ref:   [C, Bblk]  f32   mean token (+pos emb) per batch element
    # wqkv_ref: [3C, C]    bf16  qkv_proj weight (rows 0:C Q, C:2C K, 2C:3C V)
    # bqkv_ref: [3C, 1]    f32   qkv_proj bias
    # mask_nc:  [nh, C]    bf16  head-selection mask (h == c // ch)
    # mask_cn:  [C, nh]    bf16  transpose of mask_nc
    # eexp:     [Bblk, N]  bf16  block-broadcast matrix (b == n // S)
    # esum:     [N, Bblk]  bf16  block-sum matrix (transpose of eexp)
    # wct_ref:  [C, Dout]  bf16  c_proj weight, pre-transposed
    # bc_ref:   [1, Dout]  f32   c_proj bias
    # out_ref:  [Bblk, Dout]
    C, N = x_ref.shape
    nh = num_heads
    ch = C // nh
    f32 = jnp.float32
    bf16 = jnp.bfloat16
    scale = 1.0 / math.sqrt(ch)          # == (ch ** -0.25) applied to both q and k

    xt = x_ref[...]                                                     # [C, N] bf16

    # ---- mean-token (the only query token) q/k/v: one small matmul ----------
    qkv0 = (jnp.dot(wqkv_ref[...], t0_ref[...].astype(bf16),
                    preferred_element_type=f32) + bqkv_ref[...])        # [3C, Bblk]
    q0 = qkv0[:C, :] * scale                                            # [C, Bblk]
    k0 = qkv0[C:2 * C, :]
    v0 = qkv0[2 * C:, :]

    # ---- spatial keys for the whole batch block: ONE lane-dense matmul ------
    k_slab = (jnp.dot(wqkv_ref[C:2 * C, :], xt, preferred_element_type=f32)
              + bqkv_ref[C:2 * C, :])                                   # [C, N] f32

    # ---- per-head scores: broadcast q0 over its S lanes, reduce per head ----
    q0_slab = jnp.dot(q0.astype(bf16), eexp_ref[...],
                      preferred_element_type=f32)                       # [C, N]
    s = jnp.dot(mask_nc_ref[...], (q0_slab * k_slab).astype(bf16),
                preferred_element_type=f32)                             # [nh, N]
    s0 = jnp.dot(mask_nc_ref[...], (q0 * k0).astype(bf16),
                 preferred_element_type=f32)                            # [nh, Bblk]

    # ---- softmax over the S spatial tokens + the mean token -----------------
    # A per-head shift shared by the whole batch block is mathematically exact
    # (softmax is invariant to the shift) and avoids lane-block max reductions.
    m = jnp.maximum(jnp.max(s, axis=-1, keepdims=True),
                    jnp.max(s0, axis=-1, keepdims=True))                # [nh, 1]
    p = jnp.exp(s - m).astype(bf16)                                     # [nh, N]
    p0 = jnp.exp(s0 - m)                                                # [nh, Bblk]
    den = jnp.dot(p, esum_ref[...], preferred_element_type=f32) + p0    # [nh, Bblk]

    # ---- spatial values + per-(head, batch) weighted sum --------------------
    v_slab = (jnp.dot(wqkv_ref[2 * C:, :], xt, preferred_element_type=f32)
              + bqkv_ref[2 * C:, :])                                    # [C, N] f32
    pE = jnp.dot(mask_cn_ref[...], p, preferred_element_type=f32)       # [C, N]
    num = jnp.dot((v_slab * pE).astype(bf16), esum_ref[...],
                  preferred_element_type=f32)                           # [C, Bblk]

    # ---- fold in the mean-token value, normalize, c_proj at token 0 only ----
    p0E = jnp.dot(mask_cn_ref[...], p0.astype(bf16), preferred_element_type=f32)
    denE = jnp.dot(mask_cn_ref[...], den.astype(bf16), preferred_element_type=f32)
    a0 = (num + v0 * p0E) / denE                                        # [C, Bblk]
    out = (jnp.dot(a0.T.astype(bf16), wct_ref[...], preferred_element_type=f32)
           + bc_ref[...])                                               # [Bblk, Dout]
    out_ref[...] = out.astype(out_ref.dtype)


def _invariant_spec(shape):
    # Grid-invariant operand: constant index_map + single buffering (no pipelining win,
    # halves its VMEM footprint).
    zeros = (0,) * len(shape)
    return pl.BlockSpec(shape, lambda i: zeros, pipeline_mode=pl.Buffered(1))


@partial(jax.jit, static_argnames=("num_heads", "block_b"))
def attention_pool_2d(x, pos_emb, w_qkv, b_qkv, w_c, b_c, *, num_heads, block_b=8):
    """AttentionPool2d forward. x: [B, C, H, W]. Returns [B, output_dim]."""
    B, C, H, W = x.shape
    S = H * W
    Dout = w_c.shape[0]
    nh = num_heads
    ch = C // nh
    assert C % nh == 0
    assert pos_emb.shape == (C, S + 1)

    # Batch block: largest divisor of B <= block_b, preferring a grid of >= 2 steps so
    # the "parallel" axis can actually split across v7x's two TensorCores.
    divs = [d for d in range(1, B + 1) if B % d == 0]
    bblk = max(d for d in divs if d <= max(1, block_b))
    if B > 1 and B // bblk == 1:
        bblk = max(d for d in divs if d <= B // 2)
    G = B // bblk
    N = bblk * S

    xf = x.reshape(B, C, S).astype(jnp.float32)
    pos0 = pos_emb[:, 0].astype(jnp.float32)                  # [C]
    posx = pos_emb[:, 1:].astype(jnp.float32)                 # [C, S]

    # Mean token (+ its positional embedding), exact in f32 (wrapper-side prep so the
    # bf16 x slab never feeds the mean); channel-major per block.
    t0 = xf.mean(axis=-1) + pos0[None, :]                     # [B, C]
    t0 = t0.reshape(G, bblk, C).transpose(0, 2, 1)            # [G, C, Bblk]

    # Spatial tokens (+ pos emb, added in f32), lane-concatenated per batch block,
    # shipped as bf16 (half the dominant DMA / VMEM block; MXU consumes bf16 anyway).
    xs = (xf + posx[None]).reshape(G, bblk, C, S).transpose(0, 2, 1, 3)
    xs = xs.reshape(G, C, N).astype(jnp.bfloat16)             # [G, C, N]

    wqkv = w_qkv.astype(jnp.bfloat16)                         # [3C, C]
    bqkv = b_qkv.reshape(3 * C, 1).astype(jnp.float32)
    wct = w_c.T.astype(jnp.bfloat16)                          # [C, Dout] pre-transposed
    bc = b_c.reshape(1, Dout).astype(jnp.float32)

    # 0/1 plumbing matrices (exact in bf16), built once on host.
    heads = np.arange(C) // ch
    mask_nc = jnp.asarray(np.arange(nh)[:, None] == heads[None, :], jnp.bfloat16)
    mask_cn = jnp.asarray(heads[:, None] == np.arange(nh)[None, :], jnp.bfloat16)
    blk = np.repeat(np.arange(bblk), S)
    eexp = jnp.asarray(np.arange(bblk)[:, None] == blk[None, :], jnp.bfloat16)
    esum = jnp.asarray(blk[:, None] == np.arange(bblk)[None, :], jnp.bfloat16)

    # Explicit scoped-VMEM budget from the per-step footprint, capped at v7x's 64 MiB.
    invariant_bytes = (3 * C * C * 2 + 3 * C * 4 + 2 * nh * C * 2
                       + 2 * bblk * N * 2 + C * Dout * 2 + Dout * 4)
    blocked_bytes = 2 * (C * N * 2 + C * bblk * 4 + bblk * Dout * 4)
    interm_bytes = 4 * C * N * 4 + 4 * nh * N * 4
    vmem_limit = int(min(max(blocked_bytes + invariant_bytes + interm_bytes
                             + (4 << 20), 32 << 20), 64 << 20))

    kernel = partial(_attention_pool_kernel, num_heads=nh)
    out = pl.pallas_call(
        kernel,
        out_shape=jax.ShapeDtypeStruct((G, bblk, Dout), jnp.float32),
        grid=(G,),
        in_specs=[
            pl.BlockSpec((None, C, N), lambda i: (i, 0, 0)),     # x slab (batch-blocked)
            pl.BlockSpec((None, C, bblk), lambda i: (i, 0, 0)),  # mean token (+pos0)
            _invariant_spec((3 * C, C)),                         # qkv weight (bf16)
            _invariant_spec((3 * C, 1)),                         # qkv bias
            _invariant_spec((nh, C)),                            # head mask
            _invariant_spec((C, nh)),                            # head mask^T
            _invariant_spec((bblk, N)),                          # block-broadcast
            _invariant_spec((N, bblk)),                          # block-sum
            _invariant_spec((C, Dout)),                          # c_proj weight^T (bf16)
            _invariant_spec((1, Dout)),                          # c_proj bias
        ],
        out_specs=pl.BlockSpec((None, bblk, Dout), lambda i: (i, 0, 0)),
        compiler_params=pltpu.CompilerParams(
            dimension_semantics=("parallel",),
            vmem_limit_bytes=vmem_limit),
    )(xs, t0, wqkv, bqkv, mask_nc, mask_cn, eexp, esum, wct, bc)
    return out.reshape(B, Dout).astype(x.dtype)


def attention_pool_2d_reference(x, pos_emb, w_qkv, b_qkv, w_c, b_c, num_heads):
    """Pure-JAX mirror of the PyTorch forward pass (f32, highest matmul precision)."""
    B, C, H, W = x.shape
    S = H * W
    T = S + 1
    hp = jax.lax.Precision.HIGHEST
    xf = x.reshape(B, C, S)
    xt = jnp.concatenate([xf.mean(-1, keepdims=True), xf], axis=-1)
    xt = xt + pos_emb[None, :, :]
    qkv = jnp.einsum('oc,bct->bot', w_qkv, xt, precision=hp) + b_qkv[None, :, None]
    ch = C // num_heads
    q, k, v = jnp.split(qkv, 3, axis=1)
    q = q.reshape(B * num_heads, ch, T)
    k = k.reshape(B * num_heads, ch, T)
    v = v.reshape(B * num_heads, ch, T)
    scale = 1.0 / math.sqrt(math.sqrt(ch))
    w = jnp.einsum('bct,bcs->bts', q * scale, k * scale, precision=hp)
    w = jax.nn.softmax(w.astype(jnp.float32), axis=-1)
    a = jnp.einsum('bts,bcs->bct', w, v, precision=hp).reshape(B, C, T)
    out = jnp.einsum('oc,bct->bot', w_c, a, precision=hp) + b_c[None, :, None]
    return out[:, :, 0]


if __name__ == "__main__":
    def run_case(key, batch, spacial_dim, embed_dim, num_head_channels, output_dim,
                 w_scale, block_b):
        num_heads = embed_dim // num_head_channels
        S = spacial_dim ** 2
        k1, k2, k3, k4, k5, k6 = jax.random.split(key, 6)
        x = jax.random.normal(k1, (batch, embed_dim, spacial_dim, spacial_dim),
                              jnp.float32)
        pos_emb = (jax.random.normal(k2, (embed_dim, S + 1), jnp.float32)
                   / embed_dim ** 0.5)
        w_qkv = jax.random.normal(k3, (3 * embed_dim, embed_dim), jnp.float32) * w_scale
        b_qkv = jax.random.normal(k4, (3 * embed_dim,), jnp.float32) * w_scale
        w_c = jax.random.normal(k5, (output_dim, embed_dim), jnp.float32) * w_scale
        b_c = jax.random.normal(k6, (output_dim,), jnp.float32) * w_scale

        out = attention_pool_2d(x, pos_emb, w_qkv, b_qkv, w_c, b_c,
                                num_heads=num_heads, block_b=block_b)
        out = jax.block_until_ready(out)
        ref = attention_pool_2d_reference(x, pos_emb, w_qkv, b_qkv, w_c, b_c, num_heads)
        ref = jax.block_until_ready(ref)
        # bf16 MXU inputs (f32 accumulation / softmax) vs f32 reference -> loose tol.
        if not np.allclose(np.asarray(out), np.asarray(ref), atol=3e-2, rtol=3e-2):
            err = float(np.max(np.abs(np.asarray(out) - np.asarray(ref))))
            raise SystemExit(f"mismatch between Pallas kernel and reference "
                             f"(max abs err {err:.3e})")

    key = jax.random.PRNGKey(0)
    ka, kb, kc = jax.random.split(key, 3)
    # AttentionPool2d(spacial_dim=4, embed_dim=16, num_heads_channels=8), output_dim=None
    run_case(ka, batch=4, spacial_dim=4, embed_dim=16, num_head_channels=8,
             output_dim=16, w_scale=0.1, block_b=2)
    # multi-step grid (B=16, 8 batch elements per step), output_dim != embed_dim
    run_case(kb, batch=16, spacial_dim=8, embed_dim=32, num_head_channels=8,
             output_dim=64, w_scale=0.05, block_b=8)
    # block_b larger than B: exercises the "keep the grid >= 2 steps" adjustment
    run_case(kc, batch=8, spacial_dim=4, embed_dim=16, num_head_channels=4,
             output_dim=16, w_scale=0.1, block_b=32)
    print("KERNEL_OK")
</pallas_src>

<mosaic_0001>
module attributes {stable_mosaic.version = 11 : i64} {
  func.func @_attention_pool_kernel(%arg0: i32, %arg1: memref<1x16x32xbf16, #tpu.memory_space<vmem>>, %arg2: memref<1x16x2xf32, #tpu.memory_space<vmem>>, %arg3: memref<48x16xbf16, #tpu.memory_space<vmem>>, %arg4: memref<48x1xf32, #tpu.memory_space<vmem>>, %arg5: memref<2x16xbf16, #tpu.memory_space<vmem>>, %arg6: memref<16x2xbf16, #tpu.memory_space<vmem>>, %arg7: memref<2x32xbf16, #tpu.memory_space<vmem>>, %arg8: memref<32x2xbf16, #tpu.memory_space<vmem>>, %arg9: memref<16x16xbf16, #tpu.memory_space<vmem>>, %arg10: memref<1x16xf32, #tpu.memory_space<vmem>>, %arg11: memref<1x2x16xf32, #tpu.memory_space<vmem>>) attributes {dimension_semantics = [#tpu.dimension_semantics<parallel>], iteration_bounds = array<i64: 2>, scalar_prefetch = 0 : i64, scratch_operands = 0 : i64, tpu.core_type = #tpu.core_type<tc>, window_params = [{transform_indices = @transform_0, window_bounds = array<i64: 1, 16, 32>}, {transform_indices = @transform_1, window_bounds = array<i64: 1, 16, 2>}, {pipeline_mode = #tpu.pipeline_mode<synchronous>, transform_indices = @transform_2, window_bounds = array<i64: 48, 16>}, {pipeline_mode = #tpu.pipeline_mode<synchronous>, transform_indices = @transform_3, window_bounds = array<i64: 48, 1>}, {pipeline_mode = #tpu.pipeline_mode<synchronous>, transform_indices = @transform_4, window_bounds = array<i64: 2, 16>}, {pipeline_mode = #tpu.pipeline_mode<synchronous>, transform_indices = @transform_5, window_bounds = array<i64: 16, 2>}, {pipeline_mode = #tpu.pipeline_mode<synchronous>, transform_indices = @transform_6, window_bounds = array<i64: 2, 32>}, {pipeline_mode = #tpu.pipeline_mode<synchronous>, transform_indices = @transform_7, window_bounds = array<i64: 32, 2>}, {pipeline_mode = #tpu.pipeline_mode<synchronous>, transform_indices = @transform_8, window_bounds = array<i64: 16, 16>}, {pipeline_mode = #tpu.pipeline_mode<synchronous>, transform_indices = @transform_9, window_bounds = array<i64: 1, 16>}, {transform_indices = @transform_10, window_bounds = array<i64: 1, 2, 16>}]} {
    %c0 = arith.constant 0 : index
    %c0_0 = arith.constant 0 : index
    %c0_1 = arith.constant 0 : index
    %0 = vector.load %arg1[%c0, %c0_0, %c0_1] : memref<1x16x32xbf16, #tpu.memory_space<vmem>>, vector<1x16x32xbf16>
    %1 = vector.shape_cast %0 : vector<1x16x32xbf16> to vector<16x32xbf16>
    %c0_2 = arith.constant 0 : index
    %c0_3 = arith.constant 0 : index
    %2 = vector.load %arg3[%c0_2, %c0_3] : memref<48x16xbf16, #tpu.memory_space<vmem>>, vector<48x16xbf16>
    %c0_4 = arith.constant 0 : index
    %c0_5 = arith.constant 0 : index
    %c0_6 = arith.constant 0 : index
    %3 = vector.load %arg2[%c0_4, %c0_5, %c0_6] : memref<1x16x2xf32, #tpu.memory_space<vmem>>, vector<1x16x2xf32>
    %4 = vector.shape_cast %3 : vector<1x16x2xf32> to vector<16x2xf32>
    %5 = arith.truncf %4 : vector<16x2xf32> to vector<16x2xbf16>
    %cst = arith.constant dense<0.000000e+00> : vector<48x2xf32>
    %6 = tpu.matmul %2, %5, %cst {dimension_numbers = #tpu.dot_dimension_numbers<[1], [0], [0], [1], [0, 0, 1, 1], [], []>} : vector<48x16xbf16>, vector<16x2xbf16>, vector<48x2xf32> -> vector<48x2xf32>
    %c0_7 = arith.constant 0 : index
    %c0_8 = arith.constant 0 : index
    %7 = vector.load %arg4[%c0_7, %c0_8] : memref<48x1xf32, #tpu.memory_space<vmem>>, vector<48x1xf32>
    %8 = vector.broadcast %7 : vector<48x1xf32> to vector<48x2xf32>
    %9 = arith.addf %6, %8 : vector<48x2xf32>
    %10 = vector.extract_strided_slice %9 {offsets = [0, 0], sizes = [16, 2], strides = [1, 1]} : vector<48x2xf32> to vector<16x2xf32>
    %cst_9 = arith.constant 0.353553385 : f32
    %11 = vector.broadcast %cst_9 : f32 to vector<16x2xf32>
    %12 = arith.mulf %10, %11 : vector<16x2xf32>
    %13 = vector.extract_strided_slice %9 {offsets = [16, 0], sizes = [16, 2], strides = [1, 1]} : vector<48x2xf32> to vector<16x2xf32>
    %14 = vector.extract_strided_slice %9 {offsets = [32, 0], sizes = [16, 2], strides = [1, 1]} : vector<48x2xf32> to vector<16x2xf32>
    %c16 = arith.constant 16 : index
    %c0_10 = arith.constant 0 : index
    %15 = vector.load %arg3[%c16, %c0_10] : memref<48x16xbf16, #tpu.memory_space<vmem>>, vector<16x16xbf16>
    %cst_11 = arith.constant dense<0.000000e+00> : vector<16x32xf32>
    %16 = tpu.matmul %15, %1, %cst_11 {dimension_numbers = #tpu.dot_dimension_numbers<[1], [0], [0], [1], [0, 0, 1, 1], [], []>} : vector<16x16xbf16>, vector<16x32xbf16>, vector<16x32xf32> -> vector<16x32xf32>
    %c16_12 = arith.constant 16 : index
    %c0_13 = arith.constant 0 : index
    %17 = vector.load %arg4[%c16_12, %c0_13] : memref<48x1xf32, #tpu.memory_space<vmem>>, vector<16x1xf32>
    %18 = vector.broadcast %17 : vector<16x1xf32> to vector<16x32xf32>
    %19 = arith.addf %16, %18 : vector<16x32xf32>
    %20 = arith.truncf %12 : vector<16x2xf32> to vector<16x2xbf16>
    %c0_14 = arith.constant 0 : index
    %c0_15 = arith.constant 0 : index
    %21 = vector.load %arg7[%c0_14, %c0_15] : memref<2x32xbf16, #tpu.memory_space<vmem>>, vector<2x32xbf16>
    %cst_16 = arith.constant dense<0.000000e+00> : vector<16x32xf32>
    %22 = tpu.matmul %20, %21, %cst_16 {dimension_numbers = #tpu.dot_dimension_numbers<[1], [0], [0], [1], [0, 0, 1, 1], [], []>} : vector<16x2xbf16>, vector<2x32xbf16>, vector<16x32xf32> -> vector<16x32xf32>
    %c0_17 = arith.constant 0 : index
    %c0_18 = arith.constant 0 : index
    %23 = vector.load %arg5[%c0_17, %c0_18] : memref<2x16xbf16, #tpu.memory_space<vmem>>, vector<2x16xbf16>
    %24 = arith.mulf %22, %19 : vector<16x32xf32>
    %25 = arith.truncf %24 : vector<16x32xf32> to vector<16x32xbf16>
    %cst_19 = arith.constant dense<0.000000e+00> : vector<2x32xf32>
    %26 = tpu.matmul %23, %25, %cst_19 {dimension_numbers = #tpu.dot_dimension_numbers<[1], [0], [0], [1], [0, 0, 1, 1], [], []>} : vector<2x16xbf16>, vector<16x32xbf16>, vector<2x32xf32> -> vector<2x32xf32>
    %c0_20 = arith.constant 0 : index
    %c0_21 = arith.constant 0 : index
    %27 = vector.load %arg5[%c0_20, %c0_21] : memref<2x16xbf16, #tpu.memory_space<vmem>>, vector<2x16xbf16>
    %28 = arith.mulf %12, %13 : vector<16x2xf32>
    %29 = arith.truncf %28 : vector<16x2xf32> to vector<16x2xbf16>
    %cst_22 = arith.constant dense<0.000000e+00> : vector<2x2xf32>
    %30 = tpu.matmul %27, %29, %cst_22 {dimension_numbers = #tpu.dot_dimension_numbers<[1], [0], [0], [1], [0, 0, 1, 1], [], []>} : vector<2x16xbf16>, vector<16x2xbf16>, vector<2x2xf32> -> vector<2x2xf32>
    %cst_23 = arith.constant dense<0xFF800000> : vector<2xf32>
    %31 = vector.multi_reduction <maximumf>, %26, %cst_23 [1] : vector<2x32xf32> to vector<2xf32>
    %32 = vector.shape_cast %31 : vector<2xf32> to vector<2x1xf32>
    %cst_24 = arith.constant dense<0xFF800000> : vector<2xf32>
    %33 = vector.multi_reduction <maximumf>, %30, %cst_24 [1] : vector<2x2xf32> to vector<2xf32>
    %34 = vector.shape_cast %33 : vector<2xf32> to vector<2x1xf32>
    %35 = arith.maximumf %32, %34 : vector<2x1xf32>
    %36 = vector.broadcast %35 : vector<2x1xf32> to vector<2x32xf32>
    %37 = arith.subf %26, %36 : vector<2x32xf32>
    %38 = math.exp %37 : vector<2x32xf32>
    %39 = arith.truncf %38 : vector<2x32xf32> to vector<2x32xbf16>
    %40 = vector.broadcast %35 : vector<2x1xf32> to vector<2x2xf32>
    %41 = arith.subf %30, %40 : vector<2x2xf32>
    %42 = math.exp %41 : vector<2x2xf32>
    %c0_25 = arith.constant 0 : index
    %c0_26 = arith.constant 0 : index
    %43 = vector.load %arg8[%c0_25, %c0_26] : memref<32x2xbf16, #tpu.memory_space<vmem>>, vector<32x2xbf16>
    %cst_27 = arith.constant dense<0.000000e+00> : vector<2x2xf32>
    %44 = tpu.matmul %39, %43, %cst_27 {dimension_numbers = #tpu.dot_dimension_numbers<[1], [0], [0], [1], [0, 0, 1, 1], [], []>} : vector<2x32xbf16>, vector<32x2xbf16>, vector<2x2xf32> -> vector<2x2xf32>
    %45 = arith.addf %44, %42 : vector<2x2xf32>
    %c32 = arith.constant 32 : index
    %c0_28 = arith.constant 0 : index
    %46 = vector.load %arg3[%c32, %c0_28] : memref<48x16xbf16, #tpu.memory_space<vmem>>, vector<16x16xbf16>
    %cst_29 = arith.constant dense<0.000000e+00> : vector<16x32xf32>
    %47 = tpu.matmul %46, %1, %cst_29 {dimension_numbers = #tpu.dot_dimension_numbers<[1], [0], [0], [1], [0, 0, 1, 1], [], []>} : vector<16x16xbf16>, vector<16x32xbf16>, vector<16x32xf32> -> vector<16x32xf32>
    %c32_30 = arith.constant 32 : index
    %c0_31 = arith.constant 0 : index
    %48 = vector.load %arg4[%c32_30, %c0_31] : memref<48x1xf32, #tpu.memory_space<vmem>>, vector<16x1xf32>
    %49 = vector.broadcast %48 : vector<16x1xf32> to vector<16x32xf32>
    %50 = arith.addf %47, %49 : vector<16x32xf32>
    %c0_32 = arith.constant 0 : index
    %c0_33 = arith.constant 0 : index
    %51 = vector.load %arg6[%c0_32, %c0_33] : memref<16x2xbf16, #tpu.memory_space<vmem>>, vector<16x2xbf16>
    %cst_34 = arith.constant dense<0.000000e+00> : vector<16x32xf32>
    %52 = tpu.matmul %51, %39, %cst_34 {dimension_numbers = #tpu.dot_dimension_numbers<[1], [0], [0], [1], [0, 0, 1, 1], [], []>} : vector<16x2xbf16>, vector<2x32xbf16>, vector<16x32xf32> -> vector<16x32xf32>
    %53 = arith.mulf %50, %52 : vector<16x32xf32>
    %54 = arith.truncf %53 : vector<16x32xf32> to vector<16x32xbf16>
    %c0_35 = arith.constant 0 : index
    %c0_36 = arith.constant 0 : index
    %55 = vector.load %arg8[%c0_35, %c0_36] : memref<32x2xbf16, #tpu.memory_space<vmem>>, vector<32x2xbf16>
    %cst_37 = arith.constant dense<0.000000e+00> : vector<16x2xf32>
    %56 = tpu.matmul %54, %55, %cst_37 {dimension_numbers = #tpu.dot_dimension_numbers<[1], [0], [0], [1], [0, 0, 1, 1], [], []>} : vector<16x32xbf16>, vector<32x2xbf16>, vector<16x2xf32> -> vector<16x2xf32>
    %c0_38 = arith.constant 0 : index
    %c0_39 = arith.constant 0 : index
    %57 = vector.load %arg6[%c0_38, %c0_39] : memref<16x2xbf16, #tpu.memory_space<vmem>>, vector<16x2xbf16>
    %58 = arith.truncf %42 : vector<2x2xf32> to vector<2x2xbf16>
    %cst_40 = arith.constant dense<0.000000e+00> : vector<16x2xf32>
    %59 = tpu.matmul %57, %58, %cst_40 {dimension_numbers = #tpu.dot_dimension_numbers<[1], [0], [0], [1], [0, 0, 1, 1], [], []>} : vector<16x2xbf16>, vector<2x2xbf16>, vector<16x2xf32> -> vector<16x2xf32>
    %c0_41 = arith.constant 0 : index
    %c0_42 = arith.constant 0 : index
    %60 = vector.load %arg6[%c0_41, %c0_42] : memref<16x2xbf16, #tpu.memory_space<vmem>>, vector<16x2xbf16>
    %61 = arith.truncf %45 : vector<2x2xf32> to vector<2x2xbf16>
    %cst_43 = arith.constant dense<0.000000e+00> : vector<16x2xf32>
    %62 = tpu.matmul %60, %61, %cst_43 {dimension_numbers = #tpu.dot_dimension_numbers<[1], [0], [0], [1], [0, 0, 1, 1], [], []>} : vector<16x2xbf16>, vector<2x2xbf16>, vector<16x2xf32> -> vector<16x2xf32>
    %63 = arith.mulf %14, %59 : vector<16x2xf32>
    %64 = arith.addf %56, %63 : vector<16x2xf32>
    %65 = arith.divf %64, %62 : vector<16x2xf32>
    %66 = tpu.transpose %65, [1, 0] : vector<16x2xf32> -> vector<2x16xf32>
    %67 = arith.truncf %66 : vector<2x16xf32> to vector<2x16xbf16>
    %c0_44 = arith.constant 0 : index
    %c0_45 = arith.constant 0 : index
    %68 = vector.load %arg9[%c0_44, %c0_45] : memref<16x16xbf16, #tpu.memory_space<vmem>>, vector<16x16xbf16>
    %cst_46 = arith.constant dense<0.000000e+00> : vector<2x16xf32>
    %69 = tpu.matmul %67, %68, %cst_46 {dimension_numbers = #tpu.dot_dimension_numbers<[1], [0], [0], [1], [0, 0, 1, 1], [], []>} : vector<2x16xbf16>, vector<16x16xbf16>, vector<2x16xf32> -> vector<2x16xf32>
    %c0_47 = arith.constant 0 : index
    %c0_48 = arith.constant 0 : index
    %70 = vector.load %arg10[%c0_47, %c0_48] : memref<1x16xf32, #tpu.memory_space<vmem>>, vector<1x16xf32>
    %71 = vector.broadcast %70 : vector<1x16xf32> to vector<2x16xf32>
    %72 = arith.addf %69, %71 : vector<2x16xf32>
    %c0_49 = arith.constant 0 : index
    %c0_50 = arith.constant 0 : index
    %c0_51 = arith.constant 0 : index
    %73 = vector.load %arg11[%c0_49, %c0_50, %c0_51] : memref<1x2x16xf32, #tpu.memory_space<vmem>>, vector<1x2x16xf32>
    %74 = vector.shape_cast %73 : vector<1x2x16xf32> to vector<2x16xf32>
    %75 = vector.shape_cast %72 : vector<2x16xf32> to vector<1x2x16xf32>
    tpu.vector_store %arg11[%c0_49, %c0_50, %c0_51], %75 {strides = array<i32>} : memref<1x2x16xf32, #tpu.memory_space<vmem>>, vector<1x2x16xf32>,
    return
  }
  func.func @transform_0(%arg0: i32) -> (i32, i32, i32) {
    %c0_i32 = arith.constant 0 : i32
    %c0_i32_0 = arith.constant 0 : i32
    %c0_i32_1 = arith.constant 0 : i32
    return %arg0, %c0_i32, %c0_i32_0 : i32, i32, i32
  }
  func.func @transform_1(%arg0: i32) -> (i32, i32, i32) {
    %c0_i32 = arith.constant 0 : i32
    %c0_i32_0 = arith.constant 0 : i32
    %c0_i32_1 = arith.constant 0 : i32
    return %arg0, %c0_i32, %c0_i32_0 : i32, i32, i32
  }
  func.func @transform_2(%arg0: i32) -> (i32, i32) {
    %c0_i32 = arith.constant 0 : i32
    %c0_i32_0 = arith.constant 0 : i32
    %c0_i32_1 = arith.constant 0 : i32
    return %c0_i32, %c0_i32_0 : i32, i32
  }
  func.func @transform_3(%arg0: i32) -> (i32, i32) {
    %c0_i32 = arith.constant 0 : i32
    %c0_i32_0 = arith.constant 0 : i32
    %c0_i32_1 = arith.constant 0 : i32
    return %c0_i32, %c0_i32_0 : i32, i32
  }
  func.func @transform_4(%arg0: i32) -> (i32, i32) {
    %c0_i32 = arith.constant 0 : i32
    %c0_i32_0 = arith.constant 0 : i32
    %c0_i32_1 = arith.constant 0 : i32
    return %c0_i32, %c0_i32_0 : i32, i32
  }
  func.func @transform_5(%arg0: i32) -> (i32, i32) {
    %c0_i32 = arith.constant 0 : i32
    %c0_i32_0 = arith.constant 0 : i32
    %c0_i32_1 = arith.constant 0 : i32
    return %c0_i32, %c0_i32_0 : i32, i32
  }
  func.func @transform_6(%arg0: i32) -> (i32, i32) {
    %c0_i32 = arith.constant 0 : i32
    %c0_i32_0 = arith.constant 0 : i32
    %c0_i32_1 = arith.constant 0 : i32
    return %c0_i32, %c0_i32_0 : i32, i32
  }
  func.func @transform_7(%arg0: i32) -> (i32, i32) {
    %c0_i32 = arith.constant 0 : i32
    %c0_i32_0 = arith.constant 0 : i32
    %c0_i32_1 = arith.constant 0 : i32
    return %c0_i32, %c0_i32_0 : i32, i32
  }
  func.func @transform_8(%arg0: i32) -> (i32, i32) {
    %c0_i32 = arith.constant 0 : i32
    %c0_i32_0 = arith.constant 0 : i32
    %c0_i32_1 = arith.constant 0 : i32
    return %c0_i32, %c0_i32_0 : i32, i32
  }
  func.func @transform_9(%arg0: i32) -> (i32, i32) {
    %c0_i32 = arith.constant 0 : i32
    %c0_i32_0 = arith.constant 0 : i32
    %c0_i32_1 = arith.constant 0 : i32
    return %c0_i32, %c0_i32_0 : i32, i32
  }
  func.func @transform_10(%arg0: i32) -> (i32, i32, i32) {
    %c0_i32 = arith.constant 0 : i32
    %c0_i32_0 = arith.constant 0 : i32
    %c0_i32_1 = arith.constant 0 : i32
    return %arg0, %c0_i32, %c0_i32_0 : i32, i32, i32
  }
}

</mosaic_0001>

<llo_original>
// kernel: attention_pool_2d.1
$region0: #{attention_pool_2d.1}
  #allocation0 [shape = 'u32[]', space=smem, size = 0x4, offset = 0x4, fixed_abs, tag = 'smem constant byte address 0x4 - core index']
  #allocation1 [shape = 'u32[144,128]{1,0:T(1,128)}', space=vmem, size = 0x12000, scoped, tag = 'internal scratch']
  %s0 = inlined_call_operand.vmem [shape: bf16[2,16,32], index: 0, kind: input, shape index: {}]
  %s1 = inlined_call_operand.vmem [shape: f32[2,16,2], index: 1, kind: input, shape index: {}]
  %s2 = inlined_call_operand.vmem [shape: bf16[48,16], index: 2, kind: input, shape index: {}]
  %s3 = inlined_call_operand.vmem [shape: f32[48,1], index: 3, kind: input, shape index: {}]
  %s4 = inlined_call_operand.vmem [shape: bf16[2,16], index: 4, kind: input, shape index: {}]
  %s5 = inlined_call_operand.vmem [shape: bf16[16,2], index: 5, kind: input, shape index: {}]
  %s6 = inlined_call_operand.vmem [shape: bf16[2,32], index: 6, kind: input, shape index: {}]
  %s7 = inlined_call_operand.vmem [shape: bf16[32,2], index: 7, kind: input, shape index: {}]
  %s8 = inlined_call_operand.vmem [shape: bf16[16,16], index: 8, kind: input, shape index: {}]
  %s9 = inlined_call_operand.vmem [shape: f32[1,16], index: 9, kind: input, shape index: {}]
  %s10 = inlined_call_operand.hbm [shape: f32[2,2,16], index: 10, kind: output, shape index: {}]
  %s11 = sld [smem:[#allocation0]]
  $region73: #{attention_pool_2d.1} parent=0
    _
  %s13 = ssub.s32 1, %s11
  %s14 = scalar_select 0, %s13, %s11
  $region1: #{attention_pool_2d.1} parent=0
    #allocation2 [shape = 'u8[2048]{0}', space=vmem, size = 0x800, scoped, tag = 'output window, operand 0']
    #allocation3 [shape = 's32[2]{0}', space=sflag, size = 0x8, scoped, tag = 'scoped memory for attention_pool_2d.1']
    %15 = vsyncpa [#allocation3], 0
    %s16 = scalar_lea.sflag [#allocation3], 1
    %17 = vsyncpa %s16, 0
    loop: start=0, step=1, limit=4
    $region2: #{attention_pool_2d.1} parent=1 // loop_pre_header
      _
    $region3: #{attention_pool_2d.1} parent=1 // loop_header
      %s19 = sphi 0, %s23
      %p20 = scmp.ge.s32.totalorder %s19, 4
      %s29 = sphi 0, %s31
      %s32 = sphi 0, %s29
      %s33 = sphi 0, %s32
      %s49 = sphi 0, %s33
      %s55 = sphi 0, %s57
      %s58 = sphi 0, %s55
      %s59 = sphi 0, %s58
      %s75 = sphi 0, %s59
      %s79 = sphi 0, %s79
      %s81 = sphi 0, %s79
      %s82 = sphi 0, %s81
      %s96 = sphi 0, %s82
      %s100 = sphi 0, %s100
      %s102 = sphi 0, %s100
      %s103 = sphi 0, %s102
      %s117 = sphi 0, %s103
      %s121 = sphi 0, %s121
      %s123 = sphi 0, %s121
      %s124 = sphi 0, %s123
      %s138 = sphi 0, %s124
      %s142 = sphi 0, %s142
      %s144 = sphi 0, %s142
      %s145 = sphi 0, %s144
      %s159 = sphi 0, %s145
      %s163 = sphi 0, %s163
      %s165 = sphi 0, %s163
      %s166 = sphi 0, %s165
      %s180 = sphi 0, %s166
      %s184 = sphi 0, %s184
      %s186 = sphi 0, %s184
      %s187 = sphi 0, %s186
      %s201 = sphi 0, %s187
      %s205 = sphi 0, %s205
      %s207 = sphi 0, %s205
      %s208 = sphi 0, %s207
      %s222 = sphi 0, %s208
      %s226 = sphi 0, %s226
      %s228 = sphi 0, %s226
      %s229 = sphi 0, %s228
      %s243 = sphi 0, %s229
      %s249 = sphi 0, %s251
      %s252 = sphi 0, %s249
      %s253 = sphi 0, %s252
      %s269 = sphi 0, %s253
    $region4: #{attention_pool_2d.1} parent=1 // loop_header_branch
      %22 = sbr.rel (%p20) target = $region8
    $region5: #{attention_pool_2d.1} parent=1 // loop_body
      %s24 = ssub.s32 %s19, 1
      %s25 = ssub.s32 %s19, 2
      %s26 = sadd.s32 %s19, 1
      %s27 = ssub.s32 %s19, %s26
      %p28 = scmp.eq.s32.totalorder %s27, 0
      %s30 = sadd.s32 %s29, 1
      %s31 = scalar_select %p28, %s29, %s30
      %p34 = pneg %p28
      %p35 = scmp.eq.s32.totalorder %s19, 1
      %p36 = por %p34, %p35
      %p37 = scmp.ne.s32.totalorder %s29, %s32
      %p38 = scmp.eq.s32.totalorder %s19, 0
      %p39 = por %p37, %p38
      %p40 = scmp.ne.s32.totalorder %s29, %s32
      %p41 = scmp.eq.s32.totalorder %s24, 1
      %p42 = por %p40, %p41
      %p43 = scmp.ne.s32.totalorder %s32, %s33
      %p44 = scmp.eq.s32.totalorder %s24, 0
      %p45 = por %p43, %p44
      %p46 = scmp.ne.s32.totalorder %s32, %s33
      %p47 = scmp.eq.s32.totalorder %s25, 1
      %p48 = por %p46, %p47
      %p50 = scmp.ne.s32.totalorder %s33, %s49
      %p51 = scmp.eq.s32.totalorder %s25, 0
      %p52 = por %p50, %p51
      %s53 = ssub.s32 %s19, %s26
      %p54 = scmp.eq.s32.totalorder %s53, 0
      %s56 = sadd.s32 %s55, 1
      %s57 = scalar_select %p54, %s55, %s56
      %p60 = pneg %p54
      %p61 = scmp.eq.s32.totalorder %s19, 1
      %p62 = por %p60, %p61
      %p63 = scmp.ne.s32.totalorder %s55, %s58
      %p64 = scmp.eq.s32.totalorder %s19, 0
      %p65 = por %p63, %p64
      %p66 = scmp.ne.s32.totalorder %s55, %s58
      %p67 = scmp.eq.s32.totalorder %s24, 1
      %p68 = por %p66, %p67
      %p69 = scmp.ne.s32.totalorder %s58, %s59
      %p70 = scmp.eq.s32.totalorder %s24, 0
      %p71 = por %p69, %p70
      %p72 = scmp.ne.s32.totalorder %s58, %s59
      %p73 = scmp.eq.s32.totalorder %s25, 1
      %p74 = por %p72, %p73
      %p76 = scmp.ne.s32.totalorder %s59, %s75
      %p77 = scmp.eq.s32.totalorder %s25, 0
      %p78 = por %p76, %p77
      %s80 = sadd.s32 %s79, 1
      %p83 = scmp.eq.s32.totalorder %s19, 1
      %p84 = scmp.ne.s32.totalorder %s79, %s81
      %p85 = scmp.eq.s32.totalorder %s19, 0
      %p86 = por %p84, %p85
      %p87 = scmp.ne.s32.totalorder %s79, %s81
      %p88 = scmp.eq.s32.totalorder %s24, 1
      %p89 = por %p87, %p88
      %p90 = scmp.ne.s32.totalorder %s81, %s82
      %p91 = scmp.eq.s32.totalorder %s24, 0
      %p92 = por %p90, %p91
      %p93 = scmp.ne.s32.totalorder %s81, %s82
      %p94 = scmp.eq.s32.totalorder %s25, 1
      %p95 = por %p93, %p94
      %p97 = scmp.ne.s32.totalorder %s82, %s96
      %p98 = scmp.eq.s32.totalorder %s25, 0
      %p99 = por %p97, %p98
      %s101 = sadd.s32 %s100, 1
      %p104 = scmp.eq.s32.totalorder %s19, 1
      %p105 = scmp.ne.s32.totalorder %s100, %s102
      %p106 = scmp.eq.s32.totalorder %s19, 0
      %p107 = por %p105, %p106
      %p108 = scmp.ne.s32.totalorder %s100, %s102
      %p109 = scmp.eq.s32.totalorder %s24, 1
      %p110 = por %p108, %p109
      %p111 = scmp.ne.s32.totalorder %s102, %s103
      %p112 = scmp.eq.s32.totalorder %s24, 0
      %p113 = por %p111, %p112
      %p114 = scmp.ne.s32.totalorder %s102, %s103
      %p115 = scmp.eq.s32.totalorder %s25, 1
      %p116 = por %p114, %p115
      %p118 = scmp.ne.s32.totalorder %s103, %s117
      %p119 = scmp.eq.s32.totalorder %s25, 0
      %p120 = por %p118, %p119
      %s122 = sadd.s32 %s121, 1
      %p125 = scmp.eq.s32.totalorder %s19, 1
      %p126 = scmp.ne.s32.totalorder %s121, %s123
      %p127 = scmp.eq.s32.totalorder %s19, 0
      %p128 = por %p126, %p127
      %p129 = scmp.ne.s32.totalorder %s121, %s123
      %p130 = scmp.eq.s32.totalorder %s24, 1
      %p131 = por %p129, %p130
      %p132 = scmp.ne.s32.totalorder %s123, %s124
      %p133 = scmp.eq.s32.totalorder %s24, 0
      %p134 = por %p132, %p133
      %p135 = scmp.ne.s32.totalorder %s123, %s124
      %p136 = scmp.eq.s32.totalorder %s25, 1
      %p137 = por %p135, %p136
      %p139 = scmp.ne.s32.totalorder %s124, %s138
      %p140 = scmp.eq.s32.totalorder %s25, 0
      %p141 = por %p139, %p140
      %s143 = sadd.s32 %s142, 1
      %p146 = scmp.eq.s32.totalorder %s19, 1
      %p147 = scmp.ne.s32.totalorder %s142, %s144
      %p148 = scmp.eq.s32.totalorder %s19, 0
      %p149 = por %p147, %p148
      %p150 = scmp.ne.s32.totalorder %s142, %s144
      %p151 = scmp.eq.s32.totalorder %s24, 1
      %p152 = por %p150, %p151
      %p153 = scmp.ne.s32.totalorder %s144, %s145
      %p154 = scmp.eq.s32.totalorder %s24, 0
      %p155 = por %p153, %p154
      %p156 = scmp.ne.s32.totalorder %s144, %s145
      %p157 = scmp.eq.s32.totalorder %s25, 1
      %p158 = por %p156, %p157
      %p160 = scmp.ne.s32.totalorder %s145, %s159
      %p161 = scmp.eq.s32.totalorder %s25, 0
      %p162 = por %p160, %p161
      %s164 = sadd.s32 %s163, 1
      %p167 = scmp.eq.s32.totalorder %s19, 1
      %p168 = scmp.ne.s32.totalorder %s163, %s165
      %p169 = scmp.eq.s32.totalorder %s19, 0
      %p170 = por %p168, %p169
      %p171 = scmp.ne.s32.totalorder %s163, %s165
      %p172 = scmp.eq.s32.totalorder %s24, 1
      %p173 = por %p171, %p172
      %p174 = scmp.ne.s32.totalorder %s165, %s166
      %p175 = scmp.eq.s32.totalorder %s24, 0
      %p176 = por %p174, %p175
      %p177 = scmp.ne.s32.totalorder %s165, %s166
      %p178 = scmp.eq.s32.totalorder %s25, 1
      %p179 = por %p177, %p178
      %p181 = scmp.ne.s32.totalorder %s166, %s180
      %p182 = scmp.eq.s32.totalorder %s25, 0
      %p183 = por %p181, %p182
      %s185 = sadd.s32 %s184, 1
      %p188 = scmp.eq.s32.totalorder %s19, 1
      %p189 = scmp.ne.s32.totalorder %s184, %s186
      %p190 = scmp.eq.s32.totalorder %s19, 0
      %p191 = por %p189, %p190
      %p192 = scmp.ne.s32.totalorder %s184, %s186
      %p193 = scmp.eq.s32.totalorder %s24, 1
      %p194 = por %p192, %p193
      %p195 = scmp.ne.s32.totalorder %s186, %s187
      %p196 = scmp.eq.s32.totalorder %s24, 0
      %p197 = por %p195, %p196
      %p198 = scmp.ne.s32.totalorder %s186, %s187
      %p199 = scmp.eq.s32.totalorder %s25, 1
      %p200 = por %p198, %p199
      %p202 = scmp.ne.s32.totalorder %s187, %s201
      %p203 = scmp.eq.s32.totalorder %s25, 0
      %p204 = por %p202, %p203
      %s206 = sadd.s32 %s205, 1
      %p209 = scmp.eq.s32.totalorder %s19, 1
      %p210 = scmp.ne.s32.totalorder %s205, %s207
      %p211 = scmp.eq.s32.totalorder %s19, 0
      %p212 = por %p210, %p211
      %p213 = scmp.ne.s32.totalorder %s205, %s207
      %p214 = scmp.eq.s32.totalorder %s24, 1
      %p215 = por %p213, %p214
      %p216 = scmp.ne.s32.totalorder %s207, %s208
      %p217 = scmp.eq.s32.totalorder %s24, 0
      %p218 = por %p216, %p217
      %p219 = scmp.ne.s32.totalorder %s207, %s208
      %p220 = scmp.eq.s32.totalorder %s25, 1
      %p221 = por %p219, %p220
      %p223 = scmp.ne.s32.totalorder %s208, %s222
      %p224 = scmp.eq.s32.totalorder %s25, 0
      %p225 = por %p223, %p224
      %s227 = sadd.s32 %s226, 1
      %p230 = scmp.eq.s32.totalorder %s19, 1
      %p231 = scmp.ne.s32.totalorder %s226, %s228
      %p232 = scmp.eq.s32.totalorder %s19, 0
      %p233 = por %p231, %p232
      %p234 = scmp.ne.s32.totalorder %s226, %s228
      %p235 = scmp.eq.s32.totalorder %s24, 1
      %p236 = por %p234, %p235
      %p237 = scmp.ne.s32.totalorder %s228, %s229
      %p238 = scmp.eq.s32.totalorder %s24, 0
      %p239 = por %p237, %p238
      %p240 = scmp.ne.s32.totalorder %s228, %s229
      %p241 = scmp.eq.s32.totalorder %s25, 1
      %p242 = por %p240, %p241
      %p244 = scmp.ne.s32.totalorder %s229, %s243
      %p245 = scmp.eq.s32.totalorder %s25, 0
      %p246 = por %p244, %p245
      %s247 = ssub.s32 %s19, %s26
      %p248 = scmp.eq.s32.totalorder %s247, 0
      %s250 = sadd.s32 %s249, 1
      %s251 = scalar_select %p248, %s249, %s250
      %p254 = pneg %p248
      %p255 = scmp.eq.s32.totalorder %s19, 1
      %p256 = por %p254, %p255
      %p257 = scmp.ne.s32.totalorder %s249, %s252
      %p258 = scmp.eq.s32.totalorder %s19, 0
      %p259 = por %p257, %p258
      %p260 = scmp.ne.s32.totalorder %s249, %s252
      %p261 = scmp.eq.s32.totalorder %s24, 1
      %p262 = por %p260, %p261
      %p263 = scmp.ne.s32.totalorder %s252, %s253
      %p264 = scmp.eq.s32.totalorder %s24, 0
      %p265 = por %p263, %p264
      %p266 = scmp.ne.s32.totalorder %s252, %s253
      %p267 = scmp.eq.s32.totalorder %s25, 1
      %p268 = por %p266, %p267
      %p270 = scmp.ne.s32.totalorder %s253, %s269
      %p271 = scmp.eq.s32.totalorder %s25, 0
      %p272 = por %p270, %p271
      %p273 = scmp.le.s32.totalorder 1, %s19
      %p274 = scmp.lt.s32.totalorder %s19, 3
      %p275 = pnand %p273, %p274
      %p276 = pneg %p275
      // Predicated region
      $region9: #{attention_pool_2d.1} parent=5 // pred_check
        _
      $region10: #{attention_pool_2d.1} parent=5 // pred_check_branch
        %278 = sbr.rel (%p275) target = $region12
      $region11: #{attention_pool_2d.1} parent=5 // pred_region
        %s279 = ssub.s32 %s19, 1
        // Predicated region
        $region13: #{attention_pool_2d.1} parent=11 // pred_check
          %p280 = pneg %p92
        $region14: #{attention_pool_2d.1} parent=11 // pred_check_branch
          %282 = sbr.rel (%p280) target = $region16
        $region15: #{attention_pool_2d.1} parent=11 // pred_region
          _
        $region16: #{attention_pool_2d.1} parent=11 // pred_fallthru
          _
        // Predicated region
        $region17: #{attention_pool_2d.1} parent=11 // pred_check
          %p283 = pneg %p113
        $region18: #{attention_pool_2d.1} parent=11 // pred_check_branch
          %285 = sbr.rel (%p283) target = $region20
        $region19: #{attention_pool_2d.1} parent=11 // pred_region
          _
        $region20: #{attention_pool_2d.1} parent=11 // pred_fallthru
          _
        // Predicated region
        $region21: #{attention_pool_2d.1} parent=11 // pred_check
          %p286 = pneg %p134
        $region22: #{attention_pool_2d.1} parent=11 // pred_check_branch
          %288 = sbr.rel (%p286) target = $region24
        $region23: #{attention_pool_2d.1} parent=11 // pred_region
          _
        $region24: #{attention_pool_2d.1} parent=11 // pred_fallthru
          _
        // Predicated region
        $region25: #{attention_pool_2d.1} parent=11 // pred_check
          %p289 = pneg %p155
        $region26: #{attention_pool_2d.1} parent=11 // pred_check_branch
          %291 = sbr.rel (%p289) target = $region28
        $region27: #{attention_pool_2d.1} parent=11 // pred_region
          _
        $region28: #{attention_pool_2d.1} parent=11 // pred_fallthru
          _
        // Predicated region
        $region29: #{attention_pool_2d.1} parent=11 // pred_check
          %p292 = pneg %p176
        $region30: #{attention_pool_2d.1} parent=11 // pred_check_branch
          %294 = sbr.rel (%p292) target = $region32
        $region31: #{attention_pool_2d.1} parent=11 // pred_region
          _
        $region32: #{attention_pool_2d.1} parent=11 // pred_fallthru
          _
        // Predicated region
        $region33: #{attention_pool_2d.1} parent=11 // pred_check
          %p295 = pneg %p197
        $region34: #{attention_pool_2d.1} parent=11 // pred_check_branch
          %297 = sbr.rel (%p295) target = $region36
        $region35: #{attention_pool_2d.1} parent=11 // pred_region
          _
        $region36: #{attention_pool_2d.1} parent=11 // pred_fallthru
          _
        // Predicated region
        $region37: #{attention_pool_2d.1} parent=11 // pred_check
          %p298 = pneg %p218
        $region38: #{attention_pool_2d.1} parent=11 // pred_check_branch
          %300 = sbr.rel (%p298) target = $region40
        $region39: #{attention_pool_2d.1} parent=11 // pred_region
          _
        $region40: #{attention_pool_2d.1} parent=11 // pred_fallthru
          _
        // Predicated region
        $region41: #{attention_pool_2d.1} parent=11 // pred_check
          %p301 = pneg %p239
        $region42: #{attention_pool_2d.1} parent=11 // pred_check_branch
          %303 = sbr.rel (%p301) target = $region44
        $region43: #{attention_pool_2d.1} parent=11 // pred_region
          _
        $region44: #{attention_pool_2d.1} parent=11 // pred_fallthru
          _
      $region12: #{attention_pool_2d.1} parent=5 // pred_fallthru
        _
      %p304 = scmp.lt.s32.totalorder %s19, 2
      // Predicated region
      $region45: #{attention_pool_2d.1} parent=5 // pred_check
        %p305 = pneg %p304
      $region46: #{attention_pool_2d.1} parent=5 // pred_check_branch
        %307 = sbr.rel (%p305) target = $region48
      $region47: #{attention_pool_2d.1} parent=5 // pred_region
        // Predicated region
        $region49: #{attention_pool_2d.1} parent=47 // pred_check
          %p308 = pneg %p39
        $region50: #{attention_pool_2d.1} parent=47 // pred_check_branch
          %310 = sbr.rel (%p308) target = $region52
        $region51: #{attention_pool_2d.1} parent=47 // pred_region
          %p311 = scmp.lt.s32.totalorder %s19, 1
          %s312 = scalar_select %p311, %s19, 1
          %s313 = smul.addr %s312, 2
          %s314 = smul.addr %s313, 4
          %s315 = scalar_lea.vmem %s0, %s314
        $region52: #{attention_pool_2d.1} parent=47 // pred_fallthru
          _
        // Predicated region
        $region53: #{attention_pool_2d.1} parent=47 // pred_check
          %p316 = pneg %p65
        $region54: #{attention_pool_2d.1} parent=47 // pred_check_branch
          %318 = sbr.rel (%p316) target = $region56
        $region55: #{attention_pool_2d.1} parent=47 // pred_region
          %p319 = scmp.lt.s32.totalorder %s19, 1
          %s320 = scalar_select %p319, %s19, 1
          %s321 = smul.addr %s320, 2
          %s322 = smul.addr %s321, 8
          %s323 = scalar_lea.vmem %s1, %s322
        $region56: #{attention_pool_2d.1} parent=47 // pred_fallthru
          _
      $region48: #{attention_pool_2d.1} parent=5 // pred_fallthru
        _
      %p324 = scmp.le.s32.totalorder 1, %s19
      %p325 = scmp.lt.s32.totalorder %s19, 3
      %p326 = pnand %p324, %p325
      %p327 = pneg %p326
      // Predicated region
      $region57: #{attention_pool_2d.1} parent=5 // pred_check
        _
      $region58: #{attention_pool_2d.1} parent=5 // pred_check_branch
        %329 = sbr.rel (%p326) target = $region60
      $region59: #{attention_pool_2d.1} parent=5 // pred_region
        %s330 = ssub.s32 %s19, 1
        %p331 = scmp.lt.s32.totalorder %s24, 1
        %s332 = scalar_select %p331, %s24, 1
        %s333 = smul.addr %s332, 2
        %s334 = smul.addr %s333, 4
        %s335 = scalar_lea.vmem %s0, %s334
        %p336 = pneg %p45
        %p337 = pneg %p42
        %p338 = scmp.lt.s32.totalorder %s24, 1
        %s339 = scalar_select %p338, %s24, 1
        %s340 = smul.addr %s339, 2
        %s341 = smul.addr %s340, 8
        %s342 = scalar_lea.vmem %s1, %s341
        %p343 = pneg %p71
        %p344 = pneg %p68
        %p345 = pneg %p92
        %p346 = pneg %p89
        %p347 = pneg %p113
        %p348 = pneg %p110
        %p349 = pneg %p134
        %p350 = pneg %p131
        %p351 = pneg %p155
        %p352 = pneg %p152
        %p353 = pneg %p176
        %p354 = pneg %p173
        %p355 = pneg %p197
        %p356 = pneg %p194
        %p357 = pneg %p218
        %p358 = pneg %p215
        %p359 = pneg %p239
        %p360 = pneg %p236
        %p361 = pneg %p265
        %p362 = pneg %p262
        %s363 = sand.u32 %s252, 1
        %s364 = scalar_lea.sflag [#allocation3], %s363
        %s365 = sand.u32 %s252, 1
        %s366 = smul.addr %s365, 2
        %s367 = scalar_lea.vmem [#allocation2], %s366
        %p368 = scmp.lt.s32.totalorder %s24, 1
        %s369 = scalar_select %p368, %s24, 1
        %s370 = smul.addr %s369, 2
        %s371 = smul.addr %s370, 4
        %s372 = scalar_lea.vmem %s0, %s371
        %p373 = scmp.lt.s32.totalorder %s24, 1
        %s374 = scalar_select %p373, %s24, 1
        %s375 = smul.addr %s374, 2
        %s376 = smul.addr %s375, 8
        %s377 = scalar_lea.vmem %s1, %s376
        %v379 = vld [vmem:[%s372] sm:$0xf]
        %v380 = vld [vmem:[%s372 + $0x4] sm:$0xf]
        %v381 = vld [vmem:[%s2] sm:$0xf]
        %v382 = vld [vmem:[%s2 + $0x4] sm:$0xf]
        %v383 = vld [vmem:[%s2 + $0x8] sm:$0xf]
        %v384 = vld [vmem:[%s2 + $0xc] sm:$0xf]
        %v385 = vld [vmem:[%s2 + $0x10] sm:$0xf]
        %v386 = vld [vmem:[%s2 + $0x14] sm:$0xf]
        %v387 = vld [vmem:[%s377] sm:$0xff]
        %v388 = vld [vmem:[%s377 + $0x8] sm:$0xff]
        %v389 = vpack.c.bf16 %v388, %v387
        %v390 = vld [vmem:[%s3] sm:$0xff]
        %v391 = vld [vmem:[%s3 + $0x8] sm:$0xff]
        %v392 = vld [vmem:[%s3 + $0x10] sm:$0xff]
        %v393 = vld [vmem:[%s3 + $0x18] sm:$0xff]
        %v394 = vld [vmem:[%s3 + $0x20] sm:$0xff]
        %v395 = vld [vmem:[%s3 + $0x28] sm:$0xff]
        %397 = vset.pattern.permute.xlu0 0
        %398 = vperm.xlu0 %397, %v390
        %v399 = vpop.permute.xlu0 %398
        %402 = vset.pattern.permute.xlu0 0
        %403 = vperm.xlu0 %402, %v391
        %v404 = vpop.permute.xlu0 %403
        %407 = vset.pattern.permute.xlu0 0
        %408 = vperm.xlu0 %407, %v392
        %v409 = vpop.permute.xlu0 %408
        %412 = vset.pattern.permute.xlu0 0
        %413 = vperm.xlu0 %412, %v393
        %v414 = vpop.permute.xlu0 %413
        %417 = vset.pattern.permute.xlu0 0
        %418 = vperm.xlu0 %417, %v394
        %v419 = vpop.permute.xlu0 %418
        %422 = vset.pattern.permute.xlu0 0
        %423 = vperm.xlu0 %422, %v395
        %v424 = vpop.permute.xlu0 %423
        %v432 = vunpack.c.l.b16 %v381
        %v433 = vunpack.c.l.b16 %v382
        %v434 = vunpack.c.l.b16 %v383
        %v435 = vunpack.c.l.b16 %v384
        %v436 = vunpack.c.l.b16 %v385
        %v437 = vunpack.c.l.b16 %v386
        %v438 = vpack.c.b16 %v433, %v432
        %v439 = vpack.c.b16 %v435, %v434
        %v440 = vpack.c.b16 %v437, %v436
        %vm441 = vcmask 130048
        %v443 = vsel %vm441, %v438, 0
        %v446 = vsel %vm441, %v439, 0
        %v449 = vsel %vm441, %v440, 0
        %451 = vmatprep.subr.bf16.mxu0 0
        %452 = vmatpush1.bf16.msra.mxu0 %v389
        %453 = vmatprep.subr.bf16.mxu0 0
        %454 = vmatpush1.bf16.msra.mxu0 0
        %455 = vmatprep.subr.bf16.mxu0 0
        %456 = vmatpush1.bf16.msra.mxu0 0
        %457 = vmatprep.subr.bf16.mxu0 0
        %458 = vmatpush1.bf16.msra.mxu0 0
        %459 = vmatprep.subr.bf16.mxu0 0
        %460 = vmatpush1.bf16.msra.mxu0 0
        %461 = vmatprep.subr.bf16.mxu0 0
        %462 = vmatpush1.bf16.msra.mxu0 0
        %463 = vmatprep.subr.bf16.mxu0 0
        %464 = vmatpush1.bf16.msra.mxu0 0
        %465 = vmatprep.subr.bf16.mxu0 0
        %466 = vmatpush1.bf16.msra.mxu0 0
        %467 = vmatprep.subr.bf16.mxu0 0
        %468 = vmatpush1.bf16.msra.mxu0 0
        %469 = vmatprep.subr.bf16.mxu0 0
        %470 = vmatpush1.bf16.msra.mxu0 0
        %471 = vmatprep.subr.bf16.mxu0 0
        %472 = vmatpush1.bf16.msra.mxu0 0
        %473 = vmatprep.subr.bf16.mxu0 0
        %474 = vmatpush1.bf16.msra.mxu0 0
        %475 = vmatprep.subr.bf16.mxu0 0
        %476 = vmatpush1.bf16.msra.mxu0 0
        %477 = vmatprep.subr.bf16.mxu0 0
        %478 = vmatpush1.bf16.msra.mxu0 0
        %479 = vmatprep.subr.bf16.mxu0 0
        %480 = vmatpush1.bf16.msra.mxu0 0
        %481 = vmatprep.subr.bf16.mxu0 0
        %482 = vmatpush1.bf16.msra.mxu0 0
        %483 = vmatprep.mubr.bf16.mxu0 0
        %484 = vmatmul.mubr.bf16.gmra.mrb[0].mxu0 %v443
        %v485 = vpop.f32.mrb[0].mxu0
        %v486 = vadd.f32 %v399, %v485
        %v487 = vpop.f32.mrb[0].mxu0
        %v488 = vpop.f32.mrb[0].mxu0
        %v489 = vadd.f32 %v404, %v488
        %v490 = vpop.f32.mrb[0].mxu0
        %491 = vmatprep.mubr.bf16.mxu0 0
        %492 = vmatmul.mubr.bf16.gmra.mrb[0].mxu0 %v446
        %v493 = vpop.f32.mrb[0].mxu0
        %v494 = vadd.f32 %v409, %v493
        %v495 = vpop.f32.mrb[0].mxu0
        %v496 = vpop.f32.mrb[0].mxu0
        %v497 = vadd.f32 %v414, %v496
        %v498 = vpop.f32.mrb[0].mxu0
        %499 = vmatprep.mubr.bf16.mxu0 0
        %500 = vmatmul.mubr.bf16.gmra.mrb[0].mxu0 %v449
        %v501 = vpop.f32.mrb[0].mxu0
        %v502 = vadd.f32 %v419, %v501
        %v503 = vpop.f32.mrb[0].mxu0
        %v504 = vpop.f32.mrb[0].mxu0
        %v505 = vadd.f32 %v424, %v504
        %v506 = vpop.f32.mrb[0].mxu0
        %507 = vdwg.mxu0
        %v508 = vmul.f32 %v486, 0.35355338
        %v509 = vmul.f32 %v489, 0.35355338
        %v510 = vld [vmem:[%s2 + $0x8] sm:$0xf]
        %v511 = vld [vmem:[%s2 + $0xc] sm:$0xf]
        %v512 = vld [vmem:[%s3 + $0x10] sm:$0xff]
        %v513 = vld [vmem:[%s3 + $0x18] sm:$0xff]
        %515 = vset.pattern.permute.xlu0 0
        %516 = vperm.xlu0 %515, %v512
        %v517 = vpop.permute.xlu0 %516
        %520 = vset.pattern.permute.xlu0 0
        %521 = vperm.xlu0 %520, %v513
        %v522 = vpop.permute.xlu0 %521
        %v526 = vunpack.c.l.b16 %v510
        %v527 = vunpack.c.l.b16 %v511
        %v528 = vpack.c.b16 %v527, %v526
        %v531 = vunpack.c.l.b16 %v379
        %v532 = vunpack.c.l.b16 %v380
        %v533 = vpack.c.b16 %v532, %v531
        %v536 = vsel %vm441, %v528, 0
        %538 = vmatprep.subr.bf16.mxu0 0
        %539 = vmatpush1.bf16.msra.mxu0 %v533
        %540 = vmatprep.subr.bf16.mxu0 0
        %541 = vmatpush1.bf16.msra.mxu0 0
        %542 = vmatprep.subr.bf16.mxu0 0
        %543 = vmatpush1.bf16.msra.mxu0 0
        %544 = vmatprep.subr.bf16.mxu0 0
        %545 = vmatpush1.bf16.msra.mxu0 0
        %546 = vmatprep.subr.bf16.mxu0 0
        %547 = vmatpush1.bf16.msra.mxu0 0
        %548 = vmatprep.subr.bf16.mxu0 0
        %549 = vmatpush1.bf16.msra.mxu0 0
        %550 = vmatprep.subr.bf16.mxu0 0
        %551 = vmatpush1.bf16.msra.mxu0 0
        %552 = vmatprep.subr.bf16.mxu0 0
        %553 = vmatpush1.bf16.msra.mxu0 0
        %554 = vmatprep.subr.bf16.mxu0 0
        %555 = vmatpush1.bf16.msra.mxu0 0
        %556 = vmatprep.subr.bf16.mxu0 0
        %557 = vmatpush1.bf16.msra.mxu0 0
        %558 = vmatprep.subr.bf16.mxu0 0
        %559 = vmatpush1.bf16.msra.mxu0 0
        %560 = vmatprep.subr.bf16.mxu0 0
        %561 = vmatpush1.bf16.msra.mxu0 0
        %562 = vmatprep.subr.bf16.mxu0 0
        %563 = vmatpush1.bf16.msra.mxu0 0
        %564 = vmatprep.subr.bf16.mxu0 0
        %565 = vmatpush1.bf16.msra.mxu0 0
        %566 = vmatprep.subr.bf16.mxu0 0
        %567 = vmatpush1.bf16.msra.mxu0 0
        %568 = vmatprep.subr.bf16.mxu0 0
        %569 = vmatpush1.bf16.msra.mxu0 0
        %570 = vmatprep.mubr.bf16.mxu0 0
        %571 = vmatmul.mubr.bf16.gmra.mrb[0].mxu0 %v536
        %v572 = vpop.f32.mrb[0].mxu0
        %v573 = vadd.f32 %v517, %v572
        %v574 = vpop.f32.mrb[0].mxu0
        %v575 = vpop.f32.mrb[0].mxu0
        %v576 = vadd.f32 %v522, %v575
        %v577 = vpop.f32.mrb[0].mxu0
        %578 = vdwg.mxu0
        %v579 = vpack.c.bf16 %v509, %v508
        %v580 = vld [vmem:[%s6] sm:$0x1]
        %vm581 = vcmask 15360
        %v583 = vsel %vm581, %v579, 0
        %vm585 = vcmask 1040384
        %v587 = vsel %vm585, %v580, 0
        %589 = vmatprep.subr.bf16.mxu0 0
        %590 = vmatpush1.bf16.msra.mxu0 %v587
        %591 = vmatprep.subr.bf16.mxu0 0
        %592 = vmatpush1.bf16.msra.mxu0 0
        %593 = vmatprep.subr.bf16.mxu0 0
        %594 = vmatpush1.bf16.msra.mxu0 0
        %595 = vmatprep.subr.bf16.mxu0 0
        %596 = vmatpush1.bf16.msra.mxu0 0
        %597 = vmatprep.subr.bf16.mxu0 0
        %598 = vmatpush1.bf16.msra.mxu0 0
        %599 = vmatprep.subr.bf16.mxu0 0
        %600 = vmatpush1.bf16.msra.mxu0 0
        %601 = vmatprep.subr.bf16.mxu0 0
        %602 = vmatpush1.bf16.msra.mxu0 0
        %603 = vmatprep.subr.bf16.mxu0 0
        %604 = vmatpush1.bf16.msra.mxu0 0
        %605 = vmatprep.subr.bf16.mxu0 0
        %606 = vmatpush1.bf16.msra.mxu0 0
        %607 = vmatprep.subr.bf16.mxu0 0
        %608 = vmatpush1.bf16.msra.mxu0 0
        %609 = vmatprep.subr.bf16.mxu0 0
        %610 = vmatpush1.bf16.msra.mxu0 0
        %611 = vmatprep.subr.bf16.mxu0 0
        %612 = vmatpush1.bf16.msra.mxu0 0
        %613 = vmatprep.subr.bf16.mxu0 0
        %614 = vmatpush1.bf16.msra.mxu0 0
        %615 = vmatprep.subr.bf16.mxu0 0
        %616 = vmatpush1.bf16.msra.mxu0 0
        %617 = vmatprep.subr.bf16.mxu0 0
        %618 = vmatpush1.bf16.msra.mxu0 0
        %619 = vmatprep.subr.bf16.mxu0 0
        %620 = vmatpush1.bf16.msra.mxu0 0
        %621 = vmatprep.mubr.bf16.mxu0 0
        %622 = vmatmul.mubr.bf16.gmra.mrb[0].mxu0 %v583
        %v623 = vpop.f32.mrb[0].mxu0
        %v624 = vadd.f32 0.0, %v623
        %v625 = vpop.f32.mrb[0].mxu0
        %v626 = vpop.f32.mrb[0].mxu0
        %v627 = vadd.f32 0.0, %v626
        %v628 = vpop.f32.mrb[0].mxu0
        %629 = vdwg.mxu0
        %v630 = vld [vmem:[%s4] sm:$0x1]
        %v631 = vmul.f32 %v624, %v573
        %v632 = vmul.f32 %v627, %v576
        %v633 = vpack.c.bf16 %v632, %v631
        %v635 = vsel %vm441, %v630, 0
        %637 = vmatprep.subr.bf16.mxu0 0
        %638 = vmatpush1.bf16.msra.mxu0 %v633
        %639 = vmatprep.subr.bf16.mxu0 0
        %640 = vmatpush1.bf16.msra.mxu0 0
        %641 = vmatprep.subr.bf16.mxu0 0
        %642 = vmatpush1.bf16.msra.mxu0 0
        %643 = vmatprep.subr.bf16.mxu0 0
        %644 = vmatpush1.bf16.msra.mxu0 0
        %645 = vmatprep.subr.bf16.mxu0 0
        %646 = vmatpush1.bf16.msra.mxu0 0
        %647 = vmatprep.subr.bf16.mxu0 0
        %648 = vmatpush1.bf16.msra.mxu0 0
        %649 = vmatprep.subr.bf16.mxu0 0
        %650 = vmatpush1.bf16.msra.mxu0 0
        %651 = vmatprep.subr.bf16.mxu0 0
        %652 = vmatpush1.bf16.msra.mxu0 0
        %653 = vmatprep.subr.bf16.mxu0 0
        %654 = vmatpush1.bf16.msra.mxu0 0
        %655 = vmatprep.subr.bf16.mxu0 0
        %656 = vmatpush1.bf16.msra.mxu0 0
        %657 = vmatprep.subr.bf16.mxu0 0
        %658 = vmatpush1.bf16.msra.mxu0 0
        %659 = vmatprep.subr.bf16.mxu0 0
        %660 = vmatpush1.bf16.msra.mxu0 0
        %661 = vmatprep.subr.bf16.mxu0 0
        %662 = vmatpush1.bf16.msra.mxu0 0
        %663 = vmatprep.subr.bf16.mxu0 0
        %664 = vmatpush1.bf16.msra.mxu0 0
        %665 = vmatprep.subr.bf16.mxu0 0
        %666 = vmatpush1.bf16.msra.mxu0 0
        %667 = vmatprep.subr.bf16.mxu0 0
        %668 = vmatpush1.bf16.msra.mxu0 0
        %669 = vmatprep.mubr.bf16.mxu0 0
        %670 = vmatmul.mubr.bf16.gmra.mrb[0].mxu0 %v635
        %v671 = vpop.f32.mrb[0].mxu0
        %v672 = vadd.f32 0.0, %v671
        %v673 = vpop.f32.mrb[0].mxu0
        %v674 = vpop.f32.mrb[0].mxu0
        %v675 = vpop.f32.mrb[0].mxu0
        %676 = vdwg.mxu0
        %v677 = vmul.f32 %v508, %v494
        %v678 = vmul.f32 %v509, %v497
        %v679 = vpack.c.bf16 %v678, %v677
        %680 = vmatprep.subr.bf16.mxu0 0
        %681 = vmatpush1.bf16.msra.mxu0 %v679
        %682 = vmatprep.subr.bf16.mxu0 0
        %683 = vmatpush1.bf16.msra.mxu0 0
        %684 = vmatprep.subr.bf16.mxu0 0
        %685 = vmatpush1.bf16.msra.mxu0 0
        %686 = vmatprep.subr.bf16.mxu0 0
        %687 = vmatpush1.bf16.msra.mxu0 0
        %688 = vmatprep.subr.bf16.mxu0 0
        %689 = vmatpush1.bf16.msra.mxu0 0
        %690 = vmatprep.subr.bf16.mxu0 0
        %691 = vmatpush1.bf16.msra.mxu0 0
        %692 = vmatprep.subr.bf16.mxu0 0
        %693 = vmatpush1.bf16.msra.mxu0 0
        %694 = vmatprep.subr.bf16.mxu0 0
        %695 = vmatpush1.bf16.msra.mxu0 0
        %696 = vmatprep.subr.bf16.mxu0 0
        %697 = vmatpush1.bf16.msra.mxu0 0
        %698 = vmatprep.subr.bf16.mxu0 0
        %699 = vmatpush1.bf16.msra.mxu0 0
        %700 = vmatprep.subr.bf16.mxu0 0
        %701 = vmatpush1.bf16.msra.mxu0 0
        %702 = vmatprep.subr.bf16.mxu0 0
        %703 = vmatpush1.bf16.msra.mxu0 0
        %704 = vmatprep.subr.bf16.mxu0 0
        %705 = vmatpush1.bf16.msra.mxu0 0
        %706 = vmatprep.subr.bf16.mxu0 0
        %707 = vmatpush1.bf16.msra.mxu0 0
        %708 = vmatprep.subr.bf16.mxu0 0
        %709 = vmatpush1.bf16.msra.mxu0 0
        %710 = vmatprep.subr.bf16.mxu0 0
        %711 = vmatpush1.bf16.msra.mxu0 0
        %712 = vmatprep.mubr.bf16.mxu0 0
        %713 = vmatmul.mubr.bf16.gmra.mrb[0].mxu0 %v635
        %v714 = vpop.f32.mrb[0].mxu0
        %v715 = vadd.f32 0.0, %v714
        %v716 = vpop.f32.mrb[0].mxu0
        %v717 = vpop.f32.mrb[0].mxu0
        %v718 = vpop.f32.mrb[0].mxu0
        %719 = vdwg.mxu0
        %vm720 = vcmask 254976
        %v721 = vsel %vm720, %v672, -inf
        %722 = vmax.xlane.f32.xlu0 %v721
        %v723 = vpop.xlane.xlu0 %722
        %vm724 = vcmask 9216
        %v725 = vsel %vm724, %v715, -inf
        %726 = vmax.xlane.f32.xlu0 %v725
        %v727 = vpop.xlane.xlu0 %726
        %v728 = vmax.f32 %v723, %v727
        %v729 = vsub.f32 %v672, %v728
        %v730 = vmul.f32 %v729, 1.442695
        %v731 = vpow.pop %v730
        %v732 = vpack.c.bf16 %v731, %v731
        %v733 = vsub.f32 %v715, %v728
        %v734 = vmul.f32 %v733, 1.442695
        %v735 = vpow.pop %v734
        %v736 = vld [vmem:[%s7] sm:$0xf]
        %v737 = vld [vmem:[%s7 + $0x4] sm:$0xf]
        %v738 = vld [vmem:[%s7 + $0x8] sm:$0xf]
        %v739 = vld [vmem:[%s7 + $0xc] sm:$0xf]
        %v744 = vunpack.c.l.b16 %v736
        %v745 = vunpack.c.l.b16 %v737
        %v746 = vunpack.c.l.b16 %v738
        %v747 = vunpack.c.l.b16 %v739
        %v748 = vpack.c.b16 %v745, %v744
        %v749 = vpack.c.b16 %v747, %v746
        %vm752 = vcmask 261120
        %v754 = vsel %vm752, %v732, 0
        %756 = vmatprep.subr.bf16.mxu0 0
        %757 = vmatpush1.bf16.msra.mxu0 %v748
        %758 = vmatprep.subr.bf16.mxu0 0
        %759 = vmatpush1.bf16.msra.mxu0 %v749
        %760 = vmatprep.subr.bf16.mxu0 0
        %761 = vmatpush1.bf16.msra.mxu0 0
        %762 = vmatprep.subr.bf16.mxu0 0
        %763 = vmatpush1.bf16.msra.mxu0 0
        %764 = vmatprep.subr.bf16.mxu0 0
        %765 = vmatpush1.bf16.msra.mxu0 0
        %766 = vmatprep.subr.bf16.mxu0 0
        %767 = vmatpush1.bf16.msra.mxu0 0
        %768 = vmatprep.subr.bf16.mxu0 0
        %769 = vmatpush1.bf16.msra.mxu0 0
        %770 = vmatprep.subr.bf16.mxu0 0
        %771 = vmatpush1.bf16.msra.mxu0 0
        %772 = vmatprep.subr.bf16.mxu0 0
        %773 = vmatpush1.bf16.msra.mxu0 0
        %774 = vmatprep.subr.bf16.mxu0 0
        %775 = vmatpush1.bf16.msra.mxu0 0
        %776 = vmatprep.subr.bf16.mxu0 0
        %777 = vmatpush1.bf16.msra.mxu0 0
        %778 = vmatprep.subr.bf16.mxu0 0
        %779 = vmatpush1.bf16.msra.mxu0 0
        %780 = vmatprep.subr.bf16.mxu0 0
        %781 = vmatpush1.bf16.msra.mxu0 0
        %782 = vmatprep.subr.bf16.mxu0 0
        %783 = vmatpush1.bf16.msra.mxu0 0
        %784 = vmatprep.subr.bf16.mxu0 0
        %785 = vmatpush1.bf16.msra.mxu0 0
        %786 = vmatprep.subr.bf16.mxu0 0
        %787 = vmatpush1.bf16.msra.mxu0 0
        %788 = vmatprep.mubr.bf16.mxu0 0
        %789 = vmatmul.mubr.bf16.gmra.mrb[0].mxu0 %v754
        %v790 = vpop.f32.mrb[0].mxu0
        %v791 = vadd.f32 %v735, %v790
        %v792 = vpop.f32.mrb[0].mxu0
        %v793 = vpop.f32.mrb[0].mxu0
        %v794 = vpop.f32.mrb[0].mxu0
        %795 = vdwg.mxu0
        %796 = vmatprep.subr.bf16.mxu0 0
        %797 = vmatpush1.bf16.msra.mxu0 %v533
        %798 = vmatprep.subr.bf16.mxu0 0
        %799 = vmatpush1.bf16.msra.mxu0 0
        %800 = vmatprep.subr.bf16.mxu0 0
        %801 = vmatpush1.bf16.msra.mxu0 0
        %802 = vmatprep.subr.bf16.mxu0 0
        %803 = vmatpush1.bf16.msra.mxu0 0
        %804 = vmatprep.subr.bf16.mxu0 0
        %805 = vmatpush1.bf16.msra.mxu0 0
        %806 = vmatprep.subr.bf16.mxu0 0
        %807 = vmatpush1.bf16.msra.mxu0 0
        %808 = vmatprep.subr.bf16.mxu0 0
        %809 = vmatpush1.bf16.msra.mxu0 0
        %810 = vmatprep.subr.bf16.mxu0 0
        %811 = vmatpush1.bf16.msra.mxu0 0
        %812 = vmatprep.subr.bf16.mxu0 0
        %813 = vmatpush1.bf16.msra.mxu0 0
        %814 = vmatprep.subr.bf16.mxu0 0
        %815 = vmatpush1.bf16.msra.mxu0 0
        %816 = vmatprep.subr.bf16.mxu0 0
        %817 = vmatpush1.bf16.msra.mxu0 0
        %818 = vmatprep.subr.bf16.mxu0 0
        %819 = vmatpush1.bf16.msra.mxu0 0
        %820 = vmatprep.subr.bf16.mxu0 0
        %821 = vmatpush1.bf16.msra.mxu0 0
        %822 = vmatprep.subr.bf16.mxu0 0
        %823 = vmatpush1.bf16.msra.mxu0 0
        %824 = vmatprep.subr.bf16.mxu0 0
        %825 = vmatpush1.bf16.msra.mxu0 0
        %826 = vmatprep.subr.bf16.mxu0 0
        %827 = vmatpush1.bf16.msra.mxu0 0
        %828 = vmatprep.mubr.bf16.mxu0 0
        %829 = vmatmul.mubr.bf16.gmra.mrb[0].mxu0 %v449
        %v830 = vpop.f32.mrb[0].mxu0
        %v831 = vadd.f32 %v419, %v830
        %v832 = vpop.f32.mrb[0].mxu0
        %v833 = vpop.f32.mrb[0].mxu0
        %v834 = vadd.f32 %v424, %v833
        %v835 = vpop.f32.mrb[0].mxu0
        %836 = vdwg.mxu0
        %v837 = vld [vmem:[%s5] sm:$0xf]
        %v838 = vld [vmem:[%s5 + $0x4] sm:$0xf]
        %v841 = vunpack.c.l.b16 %v837
        %v842 = vunpack.c.l.b16 %v838
        %v843 = vpack.c.b16 %v842, %v841
        %v845 = vsel %vm581, %v843, 0
        %v847 = vsel %vm585, %v732, 0
        %849 = vmatprep.subr.bf16.mxu0 0
        %850 = vmatpush1.bf16.msra.mxu0 %v847
        %851 = vmatprep.subr.bf16.mxu0 0
        %852 = vmatpush1.bf16.msra.mxu0 0
        %853 = vmatprep.subr.bf16.mxu0 0
        %854 = vmatpush1.bf16.msra.mxu0 0
        %855 = vmatprep.subr.bf16.mxu0 0
        %856 = vmatpush1.bf16.msra.mxu0 0
        %857 = vmatprep.subr.bf16.mxu0 0
        %858 = vmatpush1.bf16.msra.mxu0 0
        %859 = vmatprep.subr.bf16.mxu0 0
        %860 = vmatpush1.bf16.msra.mxu0 0
        %861 = vmatprep.subr.bf16.mxu0 0
        %862 = vmatpush1.bf16.msra.mxu0 0
        %863 = vmatprep.subr.bf16.mxu0 0
        %864 = vmatpush1.bf16.msra.mxu0 0
        %865 = vmatprep.subr.bf16.mxu0 0
        %866 = vmatpush1.bf16.msra.mxu0 0
        %867 = vmatprep.subr.bf16.mxu0 0
        %868 = vmatpush1.bf16.msra.mxu0 0
        %869 = vmatprep.subr.bf16.mxu0 0
        %870 = vmatpush1.bf16.msra.mxu0 0
        %871 = vmatprep.subr.bf16.mxu0 0
        %872 = vmatpush1.bf16.msra.mxu0 0
        %873 = vmatprep.subr.bf16.mxu0 0
        %874 = vmatpush1.bf16.msra.mxu0 0
        %875 = vmatprep.subr.bf16.mxu0 0
        %876 = vmatpush1.bf16.msra.mxu0 0
        %877 = vmatprep.subr.bf16.mxu0 0
        %878 = vmatpush1.bf16.msra.mxu0 0
        %879 = vmatprep.subr.bf16.mxu0 0
        %880 = vmatpush1.bf16.msra.mxu0 0
        %881 = vmatprep.mubr.bf16.mxu0 0
        %882 = vmatmul.mubr.bf16.gmra.mrb[0].mxu0 %v845
        %v883 = vpop.f32.mrb[0].mxu0
        %v884 = vadd.f32 0.0, %v883
        %v885 = vpop.f32.mrb[0].mxu0
        %v886 = vpop.f32.mrb[0].mxu0
        %v887 = vadd.f32 0.0, %v886
        %v888 = vpop.f32.mrb[0].mxu0
        %889 = vdwg.mxu0
        %v890 = vmul.f32 %v831, %v884
        %v891 = vmul.f32 %v834, %v887
        %v892 = vpack.c.bf16 %v891, %v890
        %v893 = vpack.c.bf16 %v735, %v735
        %v895 = vsel %vm585, %v893, 0
        %897 = vmatprep.subr.bf16.mxu0 0
        %898 = vmatpush1.bf16.msra.mxu0 %v895
        %899 = vmatprep.subr.bf16.mxu0 0
        %900 = vmatpush1.bf16.msra.mxu0 0
        %901 = vmatprep.subr.bf16.mxu0 0
        %902 = vmatpush1.bf16.msra.mxu0 0
        %903 = vmatprep.subr.bf16.mxu0 0
        %904 = vmatpush1.bf16.msra.mxu0 0
        %905 = vmatprep.subr.bf16.mxu0 0
        %906 = vmatpush1.bf16.msra.mxu0 0
        %907 = vmatprep.subr.bf16.mxu0 0
        %908 = vmatpush1.bf16.msra.mxu0 0
        %909 = vmatprep.subr.bf16.mxu0 0
        %910 = vmatpush1.bf16.msra.mxu0 0
        %911 = vmatprep.subr.bf16.mxu0 0
        %912 = vmatpush1.bf16.msra.mxu0 0
        %913 = vmatprep.subr.bf16.mxu0 0
        %914 = vmatpush1.bf16.msra.mxu0 0
        %915 = vmatprep.subr.bf16.mxu0 0
        %916 = vmatpush1.bf16.msra.mxu0 0
        %917 = vmatprep.subr.bf16.mxu0 0
        %918 = vmatpush1.bf16.msra.mxu0 0
        %919 = vmatprep.subr.bf16.mxu0 0
        %920 = vmatpush1.bf16.msra.mxu0 0
        %921 = vmatprep.subr.bf16.mxu0 0
        %922 = vmatpush1.bf16.msra.mxu0 0
        %923 = vmatprep.subr.bf16.mxu0 0
        %924 = vmatpush1.bf16.msra.mxu0 0
        %925 = vmatprep.subr.bf16.mxu0 0
        %926 = vmatpush1.bf16.msra.mxu0 0
        %927 = vmatprep.subr.bf16.mxu0 0
        %928 = vmatpush1.bf16.msra.mxu0 0
        %929 = vmatprep.mubr.bf16.mxu0 0
        %930 = vmatmul.mubr.bf16.gmra.mrb[0].mxu0 %v845
        %v931 = vpop.f32.mrb[0].mxu0
        %v932 = vadd.f32 0.0, %v931
        %v933 = vpop.f32.mrb[0].mxu0
        %v934 = vpop.f32.mrb[0].mxu0
        %v935 = vadd.f32 0.0, %v934
        %v936 = vpop.f32.mrb[0].mxu0
        %937 = vdwg.mxu0
        %v938 = vpack.c.bf16 %v791, %v791
        %v940 = vsel %vm585, %v938, 0
        %942 = vmatprep.subr.bf16.mxu0 0
        %943 = vmatpush1.bf16.msra.mxu0 %v940
        %944 = vmatprep.subr.bf16.mxu0 0
        %945 = vmatpush1.bf16.msra.mxu0 0
        %946 = vmatprep.subr.bf16.mxu0 0
        %947 = vmatpush1.bf16.msra.mxu0 0
        %948 = vmatprep.subr.bf16.mxu0 0
        %949 = vmatpush1.bf16.msra.mxu0 0
        %950 = vmatprep.subr.bf16.mxu0 0
        %951 = vmatpush1.bf16.msra.mxu0 0
        %952 = vmatprep.subr.bf16.mxu0 0
        %953 = vmatpush1.bf16.msra.mxu0 0
        %954 = vmatprep.subr.bf16.mxu0 0
        %955 = vmatpush1.bf16.msra.mxu0 0
        %956 = vmatprep.subr.bf16.mxu0 0
        %957 = vmatpush1.bf16.msra.mxu0 0
        %958 = vmatprep.subr.bf16.mxu0 0
        %959 = vmatpush1.bf16.msra.mxu0 0
        %960 = vmatprep.subr.bf16.mxu0 0
        %961 = vmatpush1.bf16.msra.mxu0 0
        %962 = vmatprep.subr.bf16.mxu0 0
        %963 = vmatpush1.bf16.msra.mxu0 0
        %964 = vmatprep.subr.bf16.mxu0 0
        %965 = vmatpush1.bf16.msra.mxu0 0
        %966 = vmatprep.subr.bf16.mxu0 0
        %967 = vmatpush1.bf16.msra.mxu0 0
        %968 = vmatprep.subr.bf16.mxu0 0
        %969 = vmatpush1.bf16.msra.mxu0 0
        %970 = vmatprep.subr.bf16.mxu0 0
        %971 = vmatpush1.bf16.msra.mxu0 0
        %972 = vmatprep.subr.bf16.mxu0 0
        %973 = vmatpush1.bf16.msra.mxu0 0
        %974 = vmatprep.mubr.bf16.mxu0 0
        %975 = vmatmul.mubr.bf16.gmra.mrb[0].mxu0 %v845
        %v976 = vpop.f32.mrb[0].mxu0
        %v977 = vadd.f32 0.0, %v976
        %v978 = vpop.f32.mrb[0].mxu0
        %v979 = vpop.f32.mrb[0].mxu0
        %v980 = vadd.f32 0.0, %v979
        %v981 = vpop.f32.mrb[0].mxu0
        %982 = vdwg.mxu0
        %v983 = vmul.f32 %v502, %v932
        %v984 = vmul.f32 %v505, %v935
        %v986 = vsel %vm752, %v892, 0
        %988 = vmatprep.subr.bf16.mxu0 0
        %989 = vmatpush1.bf16.msra.mxu0 %v748
        %990 = vmatprep.subr.bf16.mxu0 0
        %991 = vmatpush1.bf16.msra.mxu0 %v749
        %992 = vmatprep.subr.bf16.mxu0 0
        %993 = vmatpush1.bf16.msra.mxu0 0
        %994 = vmatprep.subr.bf16.mxu0 0
        %995 = vmatpush1.bf16.msra.mxu0 0
        %996 = vmatprep.subr.bf16.mxu0 0
        %997 = vmatpush1.bf16.msra.mxu0 0
        %998 = vmatprep.subr.bf16.mxu0 0
        %999 = vmatpush1.bf16.msra.mxu0 0
        %1000 = vmatprep.subr.bf16.mxu0 0
        %1001 = vmatpush1.bf16.msra.mxu0 0
        %1002 = vmatprep.subr.bf16.mxu0 0
        %1003 = vmatpush1.bf16.msra.mxu0 0
        %1004 = vmatprep.subr.bf16.mxu0 0
        %1005 = vmatpush1.bf16.msra.mxu0 0
        %1006 = vmatprep.subr.bf16.mxu0 0
        %1007 = vmatpush1.bf16.msra.mxu0 0
        %1008 = vmatprep.subr.bf16.mxu0 0
        %1009 = vmatpush1.bf16.msra.mxu0 0
        %1010 = vmatprep.subr.bf16.mxu0 0
        %1011 = vmatpush1.bf16.msra.mxu0 0
        %1012 = vmatprep.subr.bf16.mxu0 0
        %1013 = vmatpush1.bf16.msra.mxu0 0
        %1014 = vmatprep.subr.bf16.mxu0 0
        %1015 = vmatpush1.bf16.msra.mxu0 0
        %1016 = vmatprep.subr.bf16.mxu0 0
        %1017 = vmatpush1.bf16.msra.mxu0 0
        %1018 = vmatprep.subr.bf16.mxu0 0
        %1019 = vmatpush1.bf16.msra.mxu0 0
        %1020 = vmatprep.mubr.bf16.mxu0 0
        %1021 = vmatmul.mubr.bf16.gmra.mrb[0].mxu0 %v986
        %v1022 = vpop.f32.mrb[0].mxu0
        %v1023 = vadd.f32 %v983, %v1022
        %v1024 = vpop.f32.mrb[0].mxu0
        %v1025 = vpop.f32.mrb[0].mxu0
        %v1026 = vadd.f32 %v984, %v1025
        %v1027 = vpop.f32.mrb[0].mxu0
        %1028 = vdwg.mxu0
        %v1029 = vrcp.pop %v977
        %v1030 = vmul.f32 %v1023, %v1029
        %v1031 = vrcp.pop %v980
        %v1032 = vmul.f32 %v1026, %v1031
        %1033 = vxpose.xlu0.b32.start [1/16] %v1030, 128
        %1034 = vxpose.xlu0.b32.cont [2/16] %v1032, 128
        %1035 = vxpose.xlu0.b32.cont [3/16] 0.0, 128
        %1036 = vxpose.xlu0.b32.cont [4/16] 0.0, 128
        %1037 = vxpose.xlu0.b32.cont [5/16] 0.0, 128
        %1038 = vxpose.xlu0.b32.cont [6/16] 0.0, 128
        %1039 = vxpose.xlu0.b32.cont [7/16] 0.0, 128
        %1040 = vxpose.xlu0.b32.cont [8/16] 0.0, 128
        %1041 = vxpose.xlu0.b32.cont [9/16] 0.0, 128
        %1042 = vxpose.xlu0.b32.cont [10/16] 0.0, 128
        %1043 = vxpose.xlu0.b32.cont [11/16] 0.0, 128
        %1044 = vxpose.xlu0.b32.cont [12/16] 0.0, 128
        %1045 = vxpose.xlu0.b32.cont [13/16] 0.0, 128
        %1046 = vxpose.xlu0.b32.cont [14/16] 0.0, 128
        %1047 = vxpose.xlu0.b32.cont [15/16] 0.0, 128
        %1048 = vxpose.xlu0.b32.end [16/16] 0.0, 128
        %v1049 = vpop.trf.xlu0
        %v1050 = vpop.trf.xlu0
        %v1051 = vpop.trf.xlu0
        %v1052 = vpop.trf.xlu0
        %v1053 = vpop.trf.xlu0
        %v1054 = vpop.trf.xlu0
        %v1055 = vpop.trf.xlu0
        %v1056 = vpop.trf.xlu0
        %v1057 = vpop.trf.xlu0
        %v1058 = vpop.trf.xlu0
        %v1059 = vpop.trf.xlu0
        %v1060 = vpop.trf.xlu0
        %v1061 = vpop.trf.xlu0
        %v1062 = vpop.trf.xlu0
        %v1063 = vpop.trf.xlu0
        %v1064 = vpop.trf.xlu0
        %v1065 = vpack.c.bf16 %v1049, %v1049
        %v1066 = vld [vmem:[%s8] sm:$0xf]
        %v1067 = vld [vmem:[%s8 + $0x4] sm:$0xf]
        %v1068 = vld [vmem:[%s9] sm:$0x1]
        %v1070 = vlaneseq
        %v1071 = vshrl.u32 %v1070, 7
        %v1072 = vsub.s32 0, %v1071
        %v1073 = vrot.slane %v1068, %v1072
        %v1077 = vunpack.c.l.b16 %v1066
        %v1078 = vunpack.c.l.b16 %v1067
        %v1079 = vpack.c.b16 %v1078, %v1077
        %v1082 = vsel %vm441, %v1065, 0
        %1084 = vmatprep.subr.bf16.mxu0 0
        %1085 = vmatpush1.bf16.msra.mxu0 %v1079
        %1086 = vmatprep.subr.bf16.mxu0 0
        %1087 = vmatpush1.bf16.msra.mxu0 0
        %1088 = vmatprep.subr.bf16.mxu0 0
        %1089 = vmatpush1.bf16.msra.mxu0 0
        %1090 = vmatprep.subr.bf16.mxu0 0
        %1091 = vmatpush1.bf16.msra.mxu0 0
        %1092 = vmatprep.subr.bf16.mxu0 0
        %1093 = vmatpush1.bf16.msra.mxu0 0
        %1094 = vmatprep.subr.bf16.mxu0 0
        %1095 = vmatpush1.bf16.msra.mxu0 0
        %1096 = vmatprep.subr.bf16.mxu0 0
        %1097 = vmatpush1.bf16.msra.mxu0 0
        %1098 = vmatprep.subr.bf16.mxu0 0
        %1099 = vmatpush1.bf16.msra.mxu0 0
        %1100 = vmatprep.subr.bf16.mxu0 0
        %1101 = vmatpush1.bf16.msra.mxu0 0
        %1102 = vmatprep.subr.bf16.mxu0 0
        %1103 = vmatpush1.bf16.msra.mxu0 0
        %1104 = vmatprep.subr.bf16.mxu0 0
        %1105 = vmatpush1.bf16.msra.mxu0 0
        %1106 = vmatprep.subr.bf16.mxu0 0
        %1107 = vmatpush1.bf16.msra.mxu0 0
        %1108 = vmatprep.subr.bf16.mxu0 0
        %1109 = vmatpush1.bf16.msra.mxu0 0
        %1110 = vmatprep.subr.bf16.mxu0 0
        %1111 = vmatpush1.bf16.msra.mxu0 0
        %1112 = vmatprep.subr.bf16.mxu0 0
        %1113 = vmatpush1.bf16.msra.mxu0 0
        %1114 = vmatprep.subr.bf16.mxu0 0
        %1115 = vmatpush1.bf16.msra.mxu0 0
        %1116 = vmatprep.mubr.bf16.mxu0 0
        %1117 = vmatmul.mubr.bf16.gmra.mrb[0].mxu0 %v1082
        %v1118 = vpop.f32.mrb[0].mxu0
        %v1119 = vadd.f32 %v1073, %v1118
        %v1120 = vpop.f32.mrb[0].mxu0
        %v1121 = vpop.f32.mrb[0].mxu0
        %v1122 = vpop.f32.mrb[0].mxu0
        %1123 = vdwg.mxu0
        %vm1124 = vcmask 123904
        %1125 = vst.msk [vmem:[%s367] sm:$0x3] %vm1124, %v1119
        %s1126 = sand.u32 %s252, 1
        %s1127 = scalar_lea.sflag [#allocation3], %s1126
        %s1128 = sand.u32 %s252, 1
        %s1129 = smul.addr %s1128, 2
        %s1130 = scalar_lea.vmem [#allocation2], %s1129
        // Predicated region
        $region61: #{attention_pool_2d.1} parent=59 // pred_check
          %p1131 = pneg %p262
        $region62: #{attention_pool_2d.1} parent=59 // pred_check_branch
          %1133 = sbr.rel (%p1131) target = $region64
        $region63: #{attention_pool_2d.1} parent=59 // pred_region
          %s1135 = ssub.s32 32, 32
          %1136 = vsyncadd %s1127, %s1135
          %s1137 = smul.addr %s24, 32
          %s1138 = scalar_lea.hbm %s10, %s1137
          %s1140 = sshll.u32 %s1130, 4
          %s1141 = int_to_ptr.vmem [resolvable:$true] %s1140
          %1143 = dma.vmem_to_hbm [thread:$0]  %s1141, 32, %s1138, %s1127
        $region64: #{attention_pool_2d.1} parent=59 // pred_fallthru
          _
      $region60: #{attention_pool_2d.1} parent=5 // pred_fallthru
        _
      %p1144 = scmp.le.s32.totalorder 2, %s19
      // Predicated region
      $region65: #{attention_pool_2d.1} parent=5 // pred_check
        %p1145 = pneg %p1144
      $region66: #{attention_pool_2d.1} parent=5 // pred_check_branch
        %1147 = sbr.rel (%p1145) target = $region68
      $region67: #{attention_pool_2d.1} parent=5 // pred_region
        %s1148 = ssub.s32 %s19, 2
        // Predicated region
        $region69: #{attention_pool_2d.1} parent=67 // pred_check
          %p1149 = pneg %p268
        $region70: #{attention_pool_2d.1} parent=67 // pred_check_branch
          %1151 = sbr.rel (%p1149) target = $region72
        $region71: #{attention_pool_2d.1} parent=67 // pred_region
          %s1152 = sand.u32 %s253, 1
          %s1153 = scalar_lea.sflag [#allocation3], %s1152
          %s1154 = sand.u32 %s253, 1
          %s1155 = smul.addr %s1154, 2
          %s1156 = scalar_lea.vmem [#allocation2], %s1155
          %1157 = dma.done %s1153, 32
        $region72: #{attention_pool_2d.1} parent=67 // pred_fallthru
          _
      $region68: #{attention_pool_2d.1} parent=5 // pred_fallthru
        _
    $region6: #{attention_pool_2d.1} parent=1 // loop_footer
      %s23 = sadd.s32 1, %s19
    $region7: #{attention_pool_2d.1} parent=1 // loop_footer_branch
      %18 = sbr.rel target = $region3
    $region8: #{attention_pool_2d.1} parent=1 // loop_exit
      _
    %1158 = vsyncpa [#allocation3], 1
    %s1159 = scalar_lea.sflag [#allocation3], 1
    %1160 = vsyncpa %s1159, 1

</llo_original>
